<compile_context>
chip_gen: v6e
topology: v6e:2x2x1
jax: 0.10.0
libtpu: 0.0.40
codegen_flags: <defaults>
</compile_context>

<pallas_src>
import math

import jax
import jax.numpy as jnp
from jax import lax
from jax.experimental import pallas as pl
from jax.experimental.pallas import tpu as pltpu

# ------------------------- configuration (small) -------------------------
B = 2                      # batch
C_IN = 3                   # image channels (NCHW)
IMG = 16                   # image spatial size
PATCH = 4                  # encoder downsample factor (stride-4 "conv")
GRID_HW = IMG // PATCH     # 4
T = GRID_HW * GRID_HW      # num_image_tokens = 16
N = B * T                  # all tokens processed in one block = 32
P = C_IN * PATCH * PATCH   # patch feature dim = 48
D = 32                     # codebook dim == transformer hidden dim
K = 64                     # num_codebook_vectors
MASK_TOKEN_ID = K          # mask token id = num_codebook_vectors
KP1 = K + 1                # transformer vocab (codebook + mask token)
VPAD = 128                 # lane-dense padded vocab / lane width
NHEAD = 4
HD = D // NHEAD            # 8
MLP = 4 * D                # 128
CHOICE_TEMPERATURE = 4.5   # unused in forward (inference-only hyper-param)
LN_EPS = 1e-5
NEG_INF = -1e30

# ------------- packed parameter-slab row offsets (static, tile-friendly) -------------
# slab A: lane width 128
A_CBT, A_WQKV, A_W1, A_WH, A_BIAS = 0, 32, 64, 96, 128
A_CBSQ, A_BQKV, A_B1, A_BH = 160, 161, 162, 163
A_ROWS = 168
# slab B: lane width 32
B_WENC, B_TOK, B_POS, B_WO, B_W2, B_HMASK = 0, 48, 176, 208, 240, 368
B_LN1G, B_LN1B, B_BO, B_LN2G, B_LN2B, B_B2, B_LNFG, B_LNFB = (
    496, 497, 498, 499, 500, 501, 502, 503)
B_ROWS = 504


def _ln(x, g, b):
    mu = jnp.mean(x, axis=-1, keepdims=True)
    xc = x - mu
    var = jnp.mean(xc * xc, axis=-1, keepdims=True)
    return xc * lax.rsqrt(var + LN_EPS) * g + b


# ======================= fused MaskGit kernel =======================
def maskgit_kernel(patch_ref, mask_ref, wa_ref, wb_ref, out_ref):
    # ---- static slab views (cheap loads from resident VMEM, 2 slab DMAs total) ----
    cbT = wa_ref[A_CBT:A_CBT + D, :]                    # (D, 128) codebook^T, pads 0
    wqkv = wa_ref[A_WQKV:A_WQKV + D, :]                 # (D, 128) lanes >= 3D are 0
    w1 = wa_ref[A_W1:A_W1 + D, :]                       # (D, MLP)
    wh = wa_ref[A_WH:A_WH + D, :]                       # (D, 128) lanes >= KP1 are 0
    abias = wa_ref[A_BIAS:A_BIAS + N, :]                # (N, H*N) block-diag batch bias
    cbsq = wa_ref[A_CBSQ:A_CBSQ + 1, :]                 # (1, 128), pads = +1e30
    bqkv = wa_ref[A_BQKV:A_BQKV + 1, :]                 # (1, 128)
    b1 = wa_ref[A_B1:A_B1 + 1, :]                       # (1, MLP)
    bh = wa_ref[A_BH:A_BH + 1, :]                       # (1, 128)

    w_enc = wb_ref[B_WENC:B_WENC + P, :]                # (P, D)
    tok = wb_ref[B_TOK:B_TOK + VPAD, :]                 # (128, D) token emb (+ mask tok)
    pos = wb_ref[B_POS:B_POS + N, :]                    # (N, D) batch-tiled pos emb
    wo = wb_ref[B_WO:B_WO + D, :]                       # (D, D)
    w2 = wb_ref[B_W2:B_W2 + MLP, :]                     # (MLP, D)
    hmask = wb_ref[B_HMASK:B_HMASK + NHEAD * N, :]      # (H*N, D) 0/1 head mask
    ln1_g = wb_ref[B_LN1G:B_LN1G + 1, :]
    ln1_b = wb_ref[B_LN1B:B_LN1B + 1, :]
    bo = wb_ref[B_BO:B_BO + 1, :]
    ln2_g = wb_ref[B_LN2G:B_LN2G + 1, :]
    ln2_b = wb_ref[B_LN2B:B_LN2B + 1, :]
    b2 = wb_ref[B_B2:B_B2 + 1, :]
    lnf_g = wb_ref[B_LNFG:B_LNFG + 1, :]
    lnf_b = wb_ref[B_LNFB:B_LNFB + 1, :]

    cols = lax.broadcasted_iota(jnp.int32, (N, VPAD), 1)            # reused 3x

    # ---- encode_to_z: patch projection + nearest-codebook index (lane-dense) ----
    ze = jnp.dot(patch_ref[...], w_enc, preferred_element_type=jnp.float32)   # (N, D)
    cross = jnp.dot(ze, cbT, preferred_element_type=jnp.float32)              # (N, 128)
    # ||ze||^2 is a per-row constant -> argmin unaffected; padded lanes preset to +1e30.
    dist = cbsq - 2.0 * cross                                                 # (N, 128)
    dmin = jnp.min(dist, axis=-1, keepdims=True)
    idx = jnp.min(jnp.where(dist <= dmin, cols, VPAD), axis=-1, keepdims=True)
    idx = idx.astype(jnp.int32)                                               # (N, 1)

    # ---- random masking (mask precomputed in wrapper) ----
    midx = jnp.where(mask_ref[...] > 0.5, MASK_TOKEN_ID, idx)                 # (N, 1)

    # ---- token embedding (one-hot matmul over 128-padded vocab) + pos emb ----
    onehot = (midx == cols).astype(jnp.float32)                               # (N, 128)
    x = jnp.dot(onehot, tok, preferred_element_type=jnp.float32) + pos        # (N, D)

    # ---- pre-LN multi-head self-attention, heads lane-stacked: scores (N, H*N) ----
    h = _ln(x, ln1_g, ln1_b)
    qkv = jnp.dot(h, wqkv, preferred_element_type=jnp.float32) + bqkv         # (N, 128)
    q = qkv[:, 0:D]
    k = qkv[:, D:2 * D]
    v = qkv[:, 2 * D:3 * D]

    # single contraction-32 scores matmul: s[n, h*N + j] = <q_h[n], k_h[j]>
    k_rep = jnp.concatenate([k, k, k, k], axis=0) * hmask                     # (H*N, D)
    s = lax.dot_general(q, k_rep, (((1,), (1,)), ((), ())),
                        preferred_element_type=jnp.float32)                   # (N, H*N)
    s = s * (1.0 / math.sqrt(HD)) + abias                                     # batch bias
    # Global row-max subtraction is for numerical stability only; per-head softmax is
    # kept exact by the per-head (lane-block) denominators below.
    p = jnp.exp(s - jnp.max(s, axis=-1, keepdims=True))                       # (N, H*N)

    v_rep = jnp.concatenate([v, v, v, v], axis=0) * hmask                     # (H*N, D)
    pv = jnp.dot(p, v_rep, preferred_element_type=jnp.float32)                # (N, D), heads merged
    denom = jnp.dot(p, hmask, preferred_element_type=jnp.float32)             # (N, D), per-head sums
    attn = pv * pl.reciprocal(denom, approx=True)                             # EUP slot
    x = x + jnp.dot(attn, wo, preferred_element_type=jnp.float32) + bo

    # ---- pre-LN MLP ----
    h = _ln(x, ln2_g, ln2_b)
    # TODO(synk): PyTorch nn.GELU defaults to exact erf; tanh approximation used here.
    m = jax.nn.gelu(jnp.dot(h, w1, preferred_element_type=jnp.float32) + b1,
                    approximate=True)
    x = x + jnp.dot(m, w2, preferred_element_type=jnp.float32) + b2

    # ---- final LN + lane-dense logits head; pack z-index into unused lane 127 ----
    x = _ln(x, lnf_g, lnf_b)
    logits = jnp.dot(x, wh, preferred_element_type=jnp.float32) + bh          # (N, 128)
    out_ref[...] = jnp.where(cols == VPAD - 1, idx.astype(jnp.float32), logits)


def _fs(shape):
    # full-array block (single grid step)
    return pl.BlockSpec(shape, lambda i: (0,) * len(shape))


def maskgit_fused(patches, mask, wa, wb):
    inputs = (patches, mask, wa, wb)                      # 4 input DMAs total
    return pl.pallas_call(
        maskgit_kernel,
        out_shape=jax.ShapeDtypeStruct((N, VPAD), jnp.float32),
        grid_spec=pltpu.PrefetchScalarGridSpec(
            num_scalar_prefetch=0,
            grid=(1,),
            in_specs=[_fs(a.shape) for a in inputs],
            out_specs=_fs((N, VPAD)),
        ),
        compiler_params=pltpu.CompilerParams(dimension_semantics=("arbitrary",)),
    )(*inputs)


# ======================= MaskGit.forward =======================
def maskgit_forward(x, prep, key):
    # x: (B, C, H, W) NCHW, as in the PyTorch module.
    b, c, hh, ww = x.shape
    gh, gw = hh // PATCH, ww // PATCH
    # patchify == stride-4 / kernel-4 encoder receptive field (glue reshape)
    patches = x.reshape(b, c, gh, PATCH, gw, PATCH)
    patches = patches.transpose(0, 2, 4, 1, 3, 5).reshape(b * gh * gw, c * PATCH * PATCH)

    # random masking (matches torch.rand_like(z_indices) < uniform(0, 1))
    k1, k2 = jax.random.split(key)
    mask_ratio = jax.random.uniform(k1, ())
    mask = (jax.random.uniform(k2, (b * gh * gw, 1)) < mask_ratio).astype(jnp.float32)

    out = maskgit_fused(patches, mask, prep["wa"], prep["wb"])
    logits = out[:, :KP1].reshape(b, T, KP1)
    z_indices = out[:, VPAD - 1].astype(jnp.int32).reshape(b, T)
    return logits, z_indices


# ======================= one-time parameter packing (hoisted off per-call path) =======================
def prepare_params(p):
    cb = p["codebook"]                                                        # (K, D)
    cbT_pad = jnp.zeros((D, VPAD), jnp.float32).at[:, :K].set(cb.T)
    cbsq_pad = jnp.full((VPAD,), 1e30, jnp.float32).at[:K].set(jnp.sum(cb * cb, axis=-1))
    wqkv_pad = jnp.zeros((D, VPAD), jnp.float32).at[:, :3 * D].set(p["wqkv"])
    bqkv_pad = jnp.zeros((VPAD,), jnp.float32).at[:3 * D].set(p["bqkv"][0])
    wh_pad = jnp.zeros((D, VPAD), jnp.float32).at[:, :KP1].set(p["wh"])
    bh_pad = jnp.zeros((VPAD,), jnp.float32).at[:KP1].set(p["bh"][0])

    # additive block-diagonal batch-attention bias for lane-stacked (N, H*N) scores
    n_idx = jnp.arange(N)[:, None]
    lane = jnp.arange(VPAD)[None, :]
    abias = jnp.where((n_idx // T) == ((lane % N) // T), 0.0, NEG_INF).astype(jnp.float32)

    # 0/1 head mask: (H*N, D), 1 iff (row // N) == (col // HD).
    # Serves three roles: masks k_rep for the merged QK matmul, masks v_rep for the
    # merged PV matmul, and acts as the per-head softmax-denominator summing matrix.
    r = jnp.arange(NHEAD * N)[:, None]
    c = jnp.arange(D)[None, :]
    hmask = ((r // N) == (c // HD)).astype(jnp.float32)

    tok_pad = jnp.zeros((VPAD, D), jnp.float32).at[:KP1, :].set(p["tok_emb"])
    pos_tiled = jnp.tile(p["pos_emb"], (B, 1))                                # (N, D)

    wa = jnp.zeros((A_ROWS, VPAD), jnp.float32)
    wa = wa.at[A_CBT:A_CBT + D].set(cbT_pad)
    wa = wa.at[A_WQKV:A_WQKV + D].set(wqkv_pad)
    wa = wa.at[A_W1:A_W1 + D].set(p["w1"])
    wa = wa.at[A_WH:A_WH + D].set(wh_pad)
    wa = wa.at[A_BIAS:A_BIAS + N].set(abias)
    wa = wa.at[A_CBSQ].set(cbsq_pad)
    wa = wa.at[A_BQKV].set(bqkv_pad)
    wa = wa.at[A_B1].set(p["b1"][0])
    wa = wa.at[A_BH].set(bh_pad)

    wb = jnp.zeros((B_ROWS, D), jnp.float32)
    wb = wb.at[B_WENC:B_WENC + P].set(p["w_enc"])
    wb = wb.at[B_TOK:B_TOK + VPAD].set(tok_pad)
    wb = wb.at[B_POS:B_POS + N].set(pos_tiled)
    wb = wb.at[B_WO:B_WO + D].set(p["wo"])
    wb = wb.at[B_W2:B_W2 + MLP].set(p["w2"])
    wb = wb.at[B_HMASK:B_HMASK + NHEAD * N].set(hmask)
    wb = wb.at[B_LN1G].set(p["ln1_g"][0])
    wb = wb.at[B_LN1B].set(p["ln1_b"][0])
    wb = wb.at[B_BO].set(p["bo"][0])
    wb = wb.at[B_LN2G].set(p["ln2_g"][0])
    wb = wb.at[B_LN2B].set(p["ln2_b"][0])
    wb = wb.at[B_B2].set(p["b2"][0])
    wb = wb.at[B_LNFG].set(p["lnf_g"][0])
    wb = wb.at[B_LNFB].set(p["lnf_b"][0])
    return {"wa": wa, "wb": wb}


# ======================= deterministic synthetic parameters =======================
def init_params(key):
    ks = jax.random.split(key, 10)
    s = 0.02
    nrm = lambda k, shp: (s * jax.random.normal(k, shp, jnp.float32))
    p = {
        "w_enc": nrm(ks[0], (P, D)),
        "codebook": jax.random.normal(ks[1], (K, D), jnp.float32),
        "tok_emb": nrm(ks[2], (KP1, D)),
        "pos_emb": nrm(ks[3], (T, D)),
        "ln1_g": jnp.ones((1, D), jnp.float32), "ln1_b": jnp.zeros((1, D), jnp.float32),
        "wqkv": nrm(ks[4], (D, 3 * D)), "bqkv": jnp.zeros((1, 3 * D), jnp.float32),
        "wo": nrm(ks[5], (D, D)), "bo": jnp.zeros((1, D), jnp.float32),
        "ln2_g": jnp.ones((1, D), jnp.float32), "ln2_b": jnp.zeros((1, D), jnp.float32),
        "w1": nrm(ks[6], (D, MLP)), "b1": jnp.zeros((1, MLP), jnp.float32),
        "w2": nrm(ks[7], (MLP, D)), "b2": jnp.zeros((1, D), jnp.float32),
        "lnf_g": jnp.ones((1, D), jnp.float32), "lnf_b": jnp.zeros((1, D), jnp.float32),
        "wh": nrm(ks[8], (D, KP1)), "bh": jnp.zeros((1, KP1), jnp.float32),
    }
    return p


if __name__ == "__main__":
    root = jax.random.PRNGKey(0)
    kx, kp, km = jax.random.split(root, 3)
    x = jax.random.normal(kx, (B, C_IN, IMG, IMG), jnp.float32)  # NCHW input
    params = init_params(kp)
    prep = prepare_params(params)          # one-time slab packing (not on per-call path)

    fwd = jax.jit(maskgit_forward)
    logits, z_indices = fwd(x, prep, km)
    logits, z_indices = jax.block_until_ready((logits, z_indices))

    assert logits.shape == (B, T, KP1) and logits.dtype == jnp.float32
    assert z_indices.shape == (B, T) and z_indices.dtype == jnp.int32
    assert bool(jnp.all((z_indices >= 0) & (z_indices < K)))
    assert bool(jnp.all(jnp.isfinite(logits)))
    print("KERNEL_OK")
</pallas_src>

<mosaic_0001>
module attributes {stable_mosaic.version = 11 : i64} {
  func.func @maskgit_kernel(%arg0: i32, %arg1: memref<32x48xf32, #tpu.memory_space<vmem>>, %arg2: memref<32x1xf32, #tpu.memory_space<vmem>>, %arg3: memref<168x128xf32, #tpu.memory_space<vmem>>, %arg4: memref<504x32xf32, #tpu.memory_space<vmem>>, %arg5: memref<32x128xf32, #tpu.memory_space<vmem>>) attributes {dimension_semantics = [#tpu.dimension_semantics<arbitrary>], iteration_bounds = array<i64: 1>, scalar_prefetch = 0 : i64, scratch_operands = 0 : i64, tpu.core_type = #tpu.core_type<tc>, window_params = [{pipeline_mode = #tpu.pipeline_mode<synchronous>, transform_indices = @transform_0, window_bounds = array<i64: 32, 48>}, {pipeline_mode = #tpu.pipeline_mode<synchronous>, transform_indices = @transform_1, window_bounds = array<i64: 32, 1>}, {pipeline_mode = #tpu.pipeline_mode<synchronous>, transform_indices = @transform_2, window_bounds = array<i64: 168, 128>}, {pipeline_mode = #tpu.pipeline_mode<synchronous>, transform_indices = @transform_3, window_bounds = array<i64: 504, 32>}, {pipeline_mode = #tpu.pipeline_mode<synchronous>, transform_indices = @transform_4, window_bounds = array<i64: 32, 128>}]} {
    %c0 = arith.constant 0 : index
    %c0_0 = arith.constant 0 : index
    %0 = vector.load %arg3[%c0, %c0_0] : memref<168x128xf32, #tpu.memory_space<vmem>>, vector<32x128xf32>
    %c32 = arith.constant 32 : index
    %c0_1 = arith.constant 0 : index
    %1 = vector.load %arg3[%c32, %c0_1] : memref<168x128xf32, #tpu.memory_space<vmem>>, vector<32x128xf32>
    %c64 = arith.constant 64 : index
    %c0_2 = arith.constant 0 : index
    %2 = vector.load %arg3[%c64, %c0_2] : memref<168x128xf32, #tpu.memory_space<vmem>>, vector<32x128xf32>
    %c96 = arith.constant 96 : index
    %c0_3 = arith.constant 0 : index
    %3 = vector.load %arg3[%c96, %c0_3] : memref<168x128xf32, #tpu.memory_space<vmem>>, vector<32x128xf32>
    %c128 = arith.constant 128 : index
    %c0_4 = arith.constant 0 : index
    %4 = vector.load %arg3[%c128, %c0_4] : memref<168x128xf32, #tpu.memory_space<vmem>>, vector<32x128xf32>
    %c160 = arith.constant 160 : index
    %c0_5 = arith.constant 0 : index
    %5 = vector.load %arg3[%c160, %c0_5] : memref<168x128xf32, #tpu.memory_space<vmem>>, vector<1x128xf32>
    %c161 = arith.constant 161 : index
    %c0_6 = arith.constant 0 : index
    %6 = vector.load %arg3[%c161, %c0_6] : memref<168x128xf32, #tpu.memory_space<vmem>>, vector<1x128xf32>
    %c162 = arith.constant 162 : index
    %c0_7 = arith.constant 0 : index
    %7 = vector.load %arg3[%c162, %c0_7] : memref<168x128xf32, #tpu.memory_space<vmem>>, vector<1x128xf32>
    %c163 = arith.constant 163 : index
    %c0_8 = arith.constant 0 : index
    %8 = vector.load %arg3[%c163, %c0_8] : memref<168x128xf32, #tpu.memory_space<vmem>>, vector<1x128xf32>
    %c0_9 = arith.constant 0 : index
    %c0_10 = arith.constant 0 : index
    %9 = vector.load %arg4[%c0_9, %c0_10] : memref<504x32xf32, #tpu.memory_space<vmem>>, vector<48x32xf32>
    %c48 = arith.constant 48 : index
    %c0_11 = arith.constant 0 : index
    %10 = vector.load %arg4[%c48, %c0_11] : memref<504x32xf32, #tpu.memory_space<vmem>>, vector<128x32xf32>
    %c176 = arith.constant 176 : index
    %c0_12 = arith.constant 0 : index
    %11 = vector.load %arg4[%c176, %c0_12] : memref<504x32xf32, #tpu.memory_space<vmem>>, vector<32x32xf32>
    %c208 = arith.constant 208 : index
    %c0_13 = arith.constant 0 : index
    %12 = vector.load %arg4[%c208, %c0_13] : memref<504x32xf32, #tpu.memory_space<vmem>>, vector<32x32xf32>
    %c240 = arith.constant 240 : index
    %c0_14 = arith.constant 0 : index
    %13 = vector.load %arg4[%c240, %c0_14] : memref<504x32xf32, #tpu.memory_space<vmem>>, vector<128x32xf32>
    %c368 = arith.constant 368 : index
    %c0_15 = arith.constant 0 : index
    %14 = vector.load %arg4[%c368, %c0_15] : memref<504x32xf32, #tpu.memory_space<vmem>>, vector<128x32xf32>
    %c496 = arith.constant 496 : index
    %c0_16 = arith.constant 0 : index
    %15 = vector.load %arg4[%c496, %c0_16] : memref<504x32xf32, #tpu.memory_space<vmem>>, vector<1x32xf32>
    %c497 = arith.constant 497 : index
    %c0_17 = arith.constant 0 : index
    %16 = vector.load %arg4[%c497, %c0_17] : memref<504x32xf32, #tpu.memory_space<vmem>>, vector<1x32xf32>
    %c498 = arith.constant 498 : index
    %c0_18 = arith.constant 0 : index
    %17 = vector.load %arg4[%c498, %c0_18] : memref<504x32xf32, #tpu.memory_space<vmem>>, vector<1x32xf32>
    %c499 = arith.constant 499 : index
    %c0_19 = arith.constant 0 : index
    %18 = vector.load %arg4[%c499, %c0_19] : memref<504x32xf32, #tpu.memory_space<vmem>>, vector<1x32xf32>
    %c500 = arith.constant 500 : index
    %c0_20 = arith.constant 0 : index
    %19 = vector.load %arg4[%c500, %c0_20] : memref<504x32xf32, #tpu.memory_space<vmem>>, vector<1x32xf32>
    %c501 = arith.constant 501 : index
    %c0_21 = arith.constant 0 : index
    %20 = vector.load %arg4[%c501, %c0_21] : memref<504x32xf32, #tpu.memory_space<vmem>>, vector<1x32xf32>
    %c502 = arith.constant 502 : index
    %c0_22 = arith.constant 0 : index
    %21 = vector.load %arg4[%c502, %c0_22] : memref<504x32xf32, #tpu.memory_space<vmem>>, vector<1x32xf32>
    %c503 = arith.constant 503 : index
    %c0_23 = arith.constant 0 : index
    %22 = vector.load %arg4[%c503, %c0_23] : memref<504x32xf32, #tpu.memory_space<vmem>>, vector<1x32xf32>
    %23 = tpu.iota {dimensions = array<i32: 1>} : vector<32x128xi32>
    %c0_24 = arith.constant 0 : index
    %c0_25 = arith.constant 0 : index
    %24 = vector.load %arg1[%c0_24, %c0_25] : memref<32x48xf32, #tpu.memory_space<vmem>>, vector<32x48xf32>
    %cst = arith.constant dense<0.000000e+00> : vector<32x32xf32>
    %25 = tpu.matmul %24, %9, %cst {dimension_numbers = #tpu.dot_dimension_numbers<[1], [0], [0], [1], [0, 0, 1, 1], [], []>} : vector<32x48xf32>, vector<48x32xf32>, vector<32x32xf32> -> vector<32x32xf32>
    %cst_26 = arith.constant dense<0.000000e+00> : vector<32x128xf32>
    %26 = tpu.matmul %25, %0, %cst_26 {dimension_numbers = #tpu.dot_dimension_numbers<[1], [0], [0], [1], [0, 0, 1, 1], [], []>} : vector<32x32xf32>, vector<32x128xf32>, vector<32x128xf32> -> vector<32x128xf32>
    %cst_27 = arith.constant 2.000000e+00 : f32
    %27 = vector.broadcast %cst_27 : f32 to vector<32x128xf32>
    %28 = arith.mulf %27, %26 : vector<32x128xf32>
    %29 = vector.broadcast %5 : vector<1x128xf32> to vector<32x128xf32>
    %30 = arith.subf %29, %28 : vector<32x128xf32>
    %cst_28 = arith.constant dense<0x7F800000> : vector<32xf32>
    %31 = vector.multi_reduction <minimumf>, %30, %cst_28 [1] : vector<32x128xf32> to vector<32xf32>
    %32 = vector.shape_cast %31 : vector<32xf32> to vector<32x1xf32>
    %33 = vector.broadcast %32 : vector<32x1xf32> to vector<32x128xf32>
    %34 = arith.cmpf ole, %30, %33 : vector<32x128xf32>
    %c128_i32 = arith.constant 128 : i32
    %35 = vector.broadcast %c128_i32 : i32 to vector<32x128xi32>
    %36 = arith.select %34, %23, %35 : vector<32x128xi1>, vector<32x128xi32>
    %cst_29 = arith.constant dense<2147483647> : vector<32xi32>
    %37 = vector.multi_reduction <minsi>, %36, %cst_29 [1] : vector<32x128xi32> to vector<32xi32>
    %38 = vector.shape_cast %37 : vector<32xi32> to vector<32x1xi32>
    %c0_30 = arith.constant 0 : index
    %c0_31 = arith.constant 0 : index
    %39 = vector.load %arg2[%c0_30, %c0_31] : memref<32x1xf32, #tpu.memory_space<vmem>>, vector<32x1xf32>
    %cst_32 = arith.constant 5.000000e-01 : f32
    %40 = vector.broadcast %cst_32 : f32 to vector<32x1xf32>
    %41 = arith.cmpf ogt, %39, %40 : vector<32x1xf32>
    %c64_i32 = arith.constant 64 : i32
    %42 = vector.broadcast %c64_i32 : i32 to vector<32x1xi32>
    %43 = arith.select %41, %42, %38 : vector<32x1xi1>, vector<32x1xi32>
    %44 = vector.broadcast %43 : vector<32x1xi32> to vector<32x128xi32>
    %45 = arith.cmpi eq, %44, %23 : vector<32x128xi32>
    %46 = arith.extui %45 : vector<32x128xi1> to vector<32x128xi32>
    %47 = arith.sitofp %46 : vector<32x128xi32> to vector<32x128xf32>
    %cst_33 = arith.constant dense<0.000000e+00> : vector<32x32xf32>
    %48 = tpu.matmul %47, %10, %cst_33 {dimension_numbers = #tpu.dot_dimension_numbers<[1], [0], [0], [1], [0, 0, 1, 1], [], []>} : vector<32x128xf32>, vector<128x32xf32>, vector<32x32xf32> -> vector<32x32xf32>
    %49 = arith.addf %48, %11 : vector<32x32xf32>
    %cst_34 = arith.constant dense<0.000000e+00> : vector<32xf32>
    %50 = vector.multi_reduction <add>, %49, %cst_34 [1] : vector<32x32xf32> to vector<32xf32>
    %51 = vector.shape_cast %50 : vector<32xf32> to vector<32x1xf32>
    %cst_35 = arith.constant 3.200000e+01 : f32
    %52 = vector.broadcast %cst_35 : f32 to vector<32x1xf32>
    %53 = arith.divf %51, %52 : vector<32x1xf32>
    %54 = vector.broadcast %53 : vector<32x1xf32> to vector<32x32xf32>
    %55 = arith.subf %49, %54 : vector<32x32xf32>
    %56 = arith.mulf %55, %55 : vector<32x32xf32>
    %cst_36 = arith.constant dense<0.000000e+00> : vector<32xf32>
    %57 = vector.multi_reduction <add>, %56, %cst_36 [1] : vector<32x32xf32> to vector<32xf32>
    %58 = vector.shape_cast %57 : vector<32xf32> to vector<32x1xf32>
    %cst_37 = arith.constant 3.200000e+01 : f32
    %59 = vector.broadcast %cst_37 : f32 to vector<32x1xf32>
    %60 = arith.divf %58, %59 : vector<32x1xf32>
    %cst_38 = arith.constant 9.99999974E-6 : f32
    %61 = vector.broadcast %cst_38 : f32 to vector<32x1xf32>
    %62 = arith.addf %60, %61 : vector<32x1xf32>
    %63 = math.rsqrt %62 : vector<32x1xf32>
    %64 = vector.broadcast %63 : vector<32x1xf32> to vector<32x32xf32>
    %65 = arith.mulf %55, %64 : vector<32x32xf32>
    %66 = vector.broadcast %15 : vector<1x32xf32> to vector<32x32xf32>
    %67 = arith.mulf %65, %66 : vector<32x32xf32>
    %68 = vector.broadcast %16 : vector<1x32xf32> to vector<32x32xf32>
    %69 = arith.addf %67, %68 : vector<32x32xf32>
    %cst_39 = arith.constant dense<0.000000e+00> : vector<32x128xf32>
    %70 = tpu.matmul %69, %1, %cst_39 {dimension_numbers = #tpu.dot_dimension_numbers<[1], [0], [0], [1], [0, 0, 1, 1], [], []>} : vector<32x32xf32>, vector<32x128xf32>, vector<32x128xf32> -> vector<32x128xf32>
    %71 = vector.broadcast %6 : vector<1x128xf32> to vector<32x128xf32>
    %72 = arith.addf %70, %71 : vector<32x128xf32>
    %73 = vector.extract_strided_slice %72 {offsets = [0, 0], sizes = [32, 32], strides = [1, 1]} : vector<32x128xf32> to vector<32x32xf32>
    %74 = vector.extract_strided_slice %72 {offsets = [0, 32], sizes = [32, 32], strides = [1, 1]} : vector<32x128xf32> to vector<32x32xf32>
    %75 = vector.extract_strided_slice %72 {offsets = [0, 64], sizes = [32, 32], strides = [1, 1]} : vector<32x128xf32> to vector<32x32xf32>
    %76 = tpu.concatenate %74, %74, %74, %74 in 0 : vector<32x32xf32>, vector<32x32xf32>, vector<32x32xf32>, vector<32x32xf32> -> vector<128x32xf32>
    %77 = arith.mulf %76, %14 : vector<128x32xf32>
    %cst_40 = arith.constant dense<0.000000e+00> : vector<32x128xf32>
    %78 = tpu.matmul %73, %77, %cst_40 {dimension_numbers = #tpu.dot_dimension_numbers<[1], [1], [0], [0], [0, 0, 1, 0], [], []>} : vector<32x32xf32>, vector<128x32xf32>, vector<32x128xf32> -> vector<32x128xf32>
    %cst_41 = arith.constant 0.353553385 : f32
    %79 = vector.broadcast %cst_41 : f32 to vector<32x128xf32>
    %80 = arith.mulf %78, %79 : vector<32x128xf32>
    %81 = arith.addf %80, %4 : vector<32x128xf32>
    %cst_42 = arith.constant dense<0xFF800000> : vector<32xf32>
    %82 = vector.multi_reduction <maximumf>, %81, %cst_42 [1] : vector<32x128xf32> to vector<32xf32>
    %83 = vector.shape_cast %82 : vector<32xf32> to vector<32x1xf32>
    %84 = vector.broadcast %83 : vector<32x1xf32> to vector<32x128xf32>
    %85 = arith.subf %81, %84 : vector<32x128xf32>
    %86 = math.exp %85 : vector<32x128xf32>
    %87 = tpu.concatenate %75, %75, %75, %75 in 0 : vector<32x32xf32>, vector<32x32xf32>, vector<32x32xf32>, vector<32x32xf32> -> vector<128x32xf32>
    %88 = arith.mulf %87, %14 : vector<128x32xf32>
    %cst_43 = arith.constant dense<0.000000e+00> : vector<32x32xf32>
    %89 = tpu.matmul %86, %88, %cst_43 {dimension_numbers = #tpu.dot_dimension_numbers<[1], [0], [0], [1], [0, 0, 1, 1], [], []>} : vector<32x128xf32>, vector<128x32xf32>, vector<32x32xf32> -> vector<32x32xf32>
    %cst_44 = arith.constant dense<0.000000e+00> : vector<32x32xf32>
    %90 = tpu.matmul %86, %14, %cst_44 {dimension_numbers = #tpu.dot_dimension_numbers<[1], [0], [0], [1], [0, 0, 1, 1], [], []>} : vector<32x128xf32>, vector<128x32xf32>, vector<32x32xf32> -> vector<32x32xf32>
    %91 = tpu.reciprocal %90 {approx = true} : vector<32x32xf32> -> vector<32x32xf32>
    %92 = arith.mulf %89, %91 : vector<32x32xf32>
    %cst_45 = arith.constant dense<0.000000e+00> : vector<32x32xf32>
    %93 = tpu.matmul %92, %12, %cst_45 {dimension_numbers = #tpu.dot_dimension_numbers<[1], [0], [0], [1], [0, 0, 1, 1], [], []>} : vector<32x32xf32>, vector<32x32xf32>, vector<32x32xf32> -> vector<32x32xf32>
    %94 = arith.addf %49, %93 : vector<32x32xf32>
    %95 = vector.broadcast %17 : vector<1x32xf32> to vector<32x32xf32>
    %96 = arith.addf %94, %95 : vector<32x32xf32>
    %cst_46 = arith.constant dense<0.000000e+00> : vector<32xf32>
    %97 = vector.multi_reduction <add>, %96, %cst_46 [1] : vector<32x32xf32> to vector<32xf32>
    %98 = vector.shape_cast %97 : vector<32xf32> to vector<32x1xf32>
    %cst_47 = arith.constant 3.200000e+01 : f32
    %99 = vector.broadcast %cst_47 : f32 to vector<32x1xf32>
    %100 = arith.divf %98, %99 : vector<32x1xf32>
    %101 = vector.broadcast %100 : vector<32x1xf32> to vector<32x32xf32>
    %102 = arith.subf %96, %101 : vector<32x32xf32>
    %103 = arith.mulf %102, %102 : vector<32x32xf32>
    %cst_48 = arith.constant dense<0.000000e+00> : vector<32xf32>
    %104 = vector.multi_reduction <add>, %103, %cst_48 [1] : vector<32x32xf32> to vector<32xf32>
    %105 = vector.shape_cast %104 : vector<32xf32> to vector<32x1xf32>
    %cst_49 = arith.constant 3.200000e+01 : f32
    %106 = vector.broadcast %cst_49 : f32 to vector<32x1xf32>
    %107 = arith.divf %105, %106 : vector<32x1xf32>
    %cst_50 = arith.constant 9.99999974E-6 : f32
    %108 = vector.broadcast %cst_50 : f32 to vector<32x1xf32>
    %109 = arith.addf %107, %108 : vector<32x1xf32>
    %110 = math.rsqrt %109 : vector<32x1xf32>
    %111 = vector.broadcast %110 : vector<32x1xf32> to vector<32x32xf32>
    %112 = arith.mulf %102, %111 : vector<32x32xf32>
    %113 = vector.broadcast %18 : vector<1x32xf32> to vector<32x32xf32>
    %114 = arith.mulf %112, %113 : vector<32x32xf32>
    %115 = vector.broadcast %19 : vector<1x32xf32> to vector<32x32xf32>
    %116 = arith.addf %114, %115 : vector<32x32xf32>
    %cst_51 = arith.constant dense<0.000000e+00> : vector<32x128xf32>
    %117 = tpu.matmul %116, %2, %cst_51 {dimension_numbers = #tpu.dot_dimension_numbers<[1], [0], [0], [1], [0, 0, 1, 1], [], []>} : vector<32x32xf32>, vector<32x128xf32>, vector<32x128xf32> -> vector<32x128xf32>
    %118 = vector.broadcast %7 : vector<1x128xf32> to vector<32x128xf32>
    %119 = arith.addf %117, %118 : vector<32x128xf32>
    %120 = arith.mulf %119, %119 : vector<32x128xf32>
    %121 = arith.mulf %119, %120 : vector<32x128xf32>
    %cst_52 = arith.constant 4.471500e-02 : f32
    %122 = vector.broadcast %cst_52 : f32 to vector<32x128xf32>
    %123 = arith.mulf %122, %121 : vector<32x128xf32>
    %124 = arith.addf %119, %123 : vector<32x128xf32>
    %cst_53 = arith.constant 0.797884583 : f32
    %125 = vector.broadcast %cst_53 : f32 to vector<32x128xf32>
    %126 = arith.mulf %125, %124 : vector<32x128xf32>
    %127 = math.tanh %126 : vector<32x128xf32>
    %cst_54 = arith.constant 1.000000e+00 : f32
    %128 = vector.broadcast %cst_54 : f32 to vector<32x128xf32>
    %129 = arith.addf %128, %127 : vector<32x128xf32>
    %cst_55 = arith.constant 5.000000e-01 : f32
    %130 = vector.broadcast %cst_55 : f32 to vector<32x128xf32>
    %131 = arith.mulf %130, %129 : vector<32x128xf32>
    %132 = arith.mulf %119, %131 : vector<32x128xf32>
    %cst_56 = arith.constant dense<0.000000e+00> : vector<32x32xf32>
    %133 = tpu.matmul %132, %13, %cst_56 {dimension_numbers = #tpu.dot_dimension_numbers<[1], [0], [0], [1], [0, 0, 1, 1], [], []>} : vector<32x128xf32>, vector<128x32xf32>, vector<32x32xf32> -> vector<32x32xf32>
    %134 = arith.addf %96, %133 : vector<32x32xf32>
    %135 = vector.broadcast %20 : vector<1x32xf32> to vector<32x32xf32>
    %136 = arith.addf %134, %135 : vector<32x32xf32>
    %cst_57 = arith.constant dense<0.000000e+00> : vector<32xf32>
    %137 = vector.multi_reduction <add>, %136, %cst_57 [1] : vector<32x32xf32> to vector<32xf32>
    %138 = vector.shape_cast %137 : vector<32xf32> to vector<32x1xf32>
    %cst_58 = arith.constant 3.200000e+01 : f32
    %139 = vector.broadcast %cst_58 : f32 to vector<32x1xf32>
    %140 = arith.divf %138, %139 : vector<32x1xf32>
    %141 = vector.broadcast %140 : vector<32x1xf32> to vector<32x32xf32>
    %142 = arith.subf %136, %141 : vector<32x32xf32>
    %143 = arith.mulf %142, %142 : vector<32x32xf32>
    %cst_59 = arith.constant dense<0.000000e+00> : vector<32xf32>
    %144 = vector.multi_reduction <add>, %143, %cst_59 [1] : vector<32x32xf32> to vector<32xf32>
    %145 = vector.shape_cast %144 : vector<32xf32> to vector<32x1xf32>
    %cst_60 = arith.constant 3.200000e+01 : f32
    %146 = vector.broadcast %cst_60 : f32 to vector<32x1xf32>
    %147 = arith.divf %145, %146 : vector<32x1xf32>
    %cst_61 = arith.constant 9.99999974E-6 : f32
    %148 = vector.broadcast %cst_61 : f32 to vector<32x1xf32>
    %149 = arith.addf %147, %148 : vector<32x1xf32>
    %150 = math.rsqrt %149 : vector<32x1xf32>
    %151 = vector.broadcast %150 : vector<32x1xf32> to vector<32x32xf32>
    %152 = arith.mulf %142, %151 : vector<32x32xf32>
    %153 = vector.broadcast %21 : vector<1x32xf32> to vector<32x32xf32>
    %154 = arith.mulf %152, %153 : vector<32x32xf32>
    %155 = vector.broadcast %22 : vector<1x32xf32> to vector<32x32xf32>
    %156 = arith.addf %154, %155 : vector<32x32xf32>
    %cst_62 = arith.constant dense<0.000000e+00> : vector<32x128xf32>
    %157 = tpu.matmul %156, %3, %cst_62 {dimension_numbers = #tpu.dot_dimension_numbers<[1], [0], [0], [1], [0, 0, 1, 1], [], []>} : vector<32x32xf32>, vector<32x128xf32>, vector<32x128xf32> -> vector<32x128xf32>
    %158 = vector.broadcast %8 : vector<1x128xf32> to vector<32x128xf32>
    %159 = arith.addf %157, %158 : vector<32x128xf32>
    %c127_i32 = arith.constant 127 : i32
    %160 = vector.broadcast %c127_i32 : i32 to vector<32x128xi32>
    %161 = arith.cmpi eq, %23, %160 : vector<32x128xi32>
    %162 = arith.sitofp %38 : vector<32x1xi32> to vector<32x1xf32>
    %163 = vector.shape_cast %162 : vector<32x1xf32> to vector<32x1xf32>
    %164 = vector.broadcast %163 : vector<32x1xf32> to vector<32x128xf32>
    %165 = arith.select %161, %164, %159 : vector<32x128xi1>, vector<32x128xf32>
    %c0_63 = arith.constant 0 : index
    %c0_64 = arith.constant 0 : index
    %166 = vector.load %arg5[%c0_63, %c0_64] : memref<32x128xf32, #tpu.memory_space<vmem>>, vector<32x128xf32>
    tpu.vector_store %arg5[%c0_63, %c0_64], %165 {strides = array<i32>} : memref<32x128xf32, #tpu.memory_space<vmem>>, vector<32x128xf32>,
    return
  }
  func.func @transform_0(%arg0: i32) -> (i32, i32) {
    %c0_i32 = arith.constant 0 : i32
    %c0_i32_0 = arith.constant 0 : i32
    %c0_i32_1 = arith.constant 0 : i32
    return %c0_i32, %c0_i32_0 : i32, i32
  }
  func.func @transform_1(%arg0: i32) -> (i32, i32) {
    %c0_i32 = arith.constant 0 : i32
    %c0_i32_0 = arith.constant 0 : i32
    %c0_i32_1 = arith.constant 0 : i32
    return %c0_i32, %c0_i32_0 : i32, i32
  }
  func.func @transform_2(%arg0: i32) -> (i32, i32) {
    %c0_i32 = arith.constant 0 : i32
    %c0_i32_0 = arith.constant 0 : i32
    %c0_i32_1 = arith.constant 0 : i32
    return %c0_i32, %c0_i32_0 : i32, i32
  }
  func.func @transform_3(%arg0: i32) -> (i32, i32) {
    %c0_i32 = arith.constant 0 : i32
    %c0_i32_0 = arith.constant 0 : i32
    %c0_i32_1 = arith.constant 0 : i32
    return %c0_i32, %c0_i32_0 : i32, i32
  }
  func.func @transform_4(%arg0: i32) -> (i32, i32) {
    %c0_i32 = arith.constant 0 : i32
    %c0_i32_0 = arith.constant 0 : i32
    %c0_i32_1 = arith.constant 0 : i32
    return %c0_i32, %c0_i32_0 : i32, i32
  }
}

</mosaic_0001>

<llo_original>
// kernel: maskgit_forward.3
$region0: #{maskgit_forward.3}
  #allocation0 [shape = 'u32[]', space=smem, size = 0x4, offset = 0x4, fixed_abs, tag = 'smem constant byte address 0x4 - core index']
  #allocation1 [shape = 'u32[144,128]{1,0:T(1,128)}', space=vmem, size = 0x12000, scoped, tag = 'internal scratch']
  %s0 = inlined_call_operand.vmem [shape: f32[32,48], index: 0, kind: input, shape index: {}]
  %s1 = inlined_call_operand.vmem [shape: f32[32,1], index: 1, kind: input, shape index: {}]
  %s2 = inlined_call_operand.vmem [shape: f32[168,128], index: 2, kind: input, shape index: {}]
  %s3 = inlined_call_operand.vmem [shape: f32[504,32], index: 3, kind: input, shape index: {}]
  %s4 = inlined_call_operand.vmem [shape: f32[32,128], index: 4, kind: output, shape index: {}]
  %s5 = sld [smem:[#allocation0]]
  $region26: #{maskgit_forward.3} parent=0
    _
  %s7 = ssub.s32 1, %s5
  %s8 = scalar_select 0, %s7, %s5
  // Predicated region
  $region2: #{maskgit_forward.3} parent=0 // pred_check
    _
  $region3: #{maskgit_forward.3} parent=0 // pred_check_branch
    %10 = sbr.rel (0) target = $region5
  $region4: #{maskgit_forward.3} parent=0 // pred_region
    _
  $region5: #{maskgit_forward.3} parent=0 // pred_fallthru
    _
  // Predicated region
  $region6: #{maskgit_forward.3} parent=0 // pred_check
    _
  $region7: #{maskgit_forward.3} parent=0 // pred_check_branch
    %12 = sbr.rel (0) target = $region9
  $region8: #{maskgit_forward.3} parent=0 // pred_region
    _
  $region9: #{maskgit_forward.3} parent=0 // pred_fallthru
    _
  // Predicated region
  $region10: #{maskgit_forward.3} parent=0 // pred_check
    _
  $region11: #{maskgit_forward.3} parent=0 // pred_check_branch
    %14 = sbr.rel (0) target = $region13
  $region12: #{maskgit_forward.3} parent=0 // pred_region
    _
  $region13: #{maskgit_forward.3} parent=0 // pred_fallthru
    _
  // Predicated region
  $region14: #{maskgit_forward.3} parent=0 // pred_check
    _
  $region15: #{maskgit_forward.3} parent=0 // pred_check_branch
    %16 = sbr.rel (0) target = $region17
  $region16: #{maskgit_forward.3} parent=0 // pred_region
    _
  $region17: #{maskgit_forward.3} parent=0 // pred_fallthru
    _
  %v17 = vld [vmem:[%s2] sm:$0xff]
  %v18 = vld [vmem:[%s2 + $0x8] sm:$0xff]
  %v19 = vld [vmem:[%s2 + $0x10] sm:$0xff]
  %v20 = vld [vmem:[%s2 + $0x18] sm:$0xff]
  %v21 = vld [vmem:[%s2 + $0x20] sm:$0xff]
  %v22 = vld [vmem:[%s2 + $0x28] sm:$0xff]
  %v23 = vld [vmem:[%s2 + $0x30] sm:$0xff]
  %v24 = vld [vmem:[%s2 + $0x38] sm:$0xff]
  %v25 = vld [vmem:[%s2 + $0x40] sm:$0xff]
  %v26 = vld [vmem:[%s2 + $0x48] sm:$0xff]
  %v27 = vld [vmem:[%s2 + $0x50] sm:$0xff]
  %v28 = vld [vmem:[%s2 + $0x58] sm:$0xff]
  %v29 = vld [vmem:[%s2 + $0x60] sm:$0xff]
  %v30 = vld [vmem:[%s2 + $0x68] sm:$0xff]
  %v31 = vld [vmem:[%s2 + $0x70] sm:$0xff]
  %v32 = vld [vmem:[%s2 + $0x78] sm:$0xff]
  %v33 = vld [vmem:[%s2 + $0x80] sm:$0xff]
  %v34 = vld [vmem:[%s2 + $0x88] sm:$0xff]
  %v35 = vld [vmem:[%s2 + $0x90] sm:$0xff]
  %v36 = vld [vmem:[%s2 + $0x98] sm:$0xff]
  %v37 = vld [vmem:[%s2 + $0xa0] sm:$0x1]
  %v38 = vld [vmem:[%s2 + $0xa1] sm:$0x1]
  %v39 = vld [vmem:[%s2 + $0xa2] sm:$0x1]
  %v40 = vld [vmem:[%s2 + $0xa3] sm:$0x1]
  %v41 = vld [vmem:[%s3] sm:$0xff]
  %v42 = vld [vmem:[%s3 + $0x8] sm:$0xff]
  %v43 = vld [vmem:[%s3 + $0x10] sm:$0xff]
  %v44 = vld [vmem:[%s3 + $0x18] sm:$0xff]
  %v45 = vld [vmem:[%s3 + $0x20] sm:$0xff]
  %v46 = vld [vmem:[%s3 + $0x28] sm:$0xff]
  %v47 = vld [vmem:[%s3 + $0x30] sm:$0xff]
  %v48 = vld [vmem:[%s3 + $0x38] sm:$0xff]
  %v49 = vld [vmem:[%s3 + $0x40] sm:$0xff]
  %v50 = vld [vmem:[%s3 + $0x48] sm:$0xff]
  %v51 = vld [vmem:[%s3 + $0x50] sm:$0xff]
  %v52 = vld [vmem:[%s3 + $0x58] sm:$0xff]
  %v53 = vld [vmem:[%s3 + $0x60] sm:$0xff]
  %v54 = vld [vmem:[%s3 + $0x68] sm:$0xff]
  %v55 = vld [vmem:[%s3 + $0x70] sm:$0xff]
  %v56 = vld [vmem:[%s3 + $0x78] sm:$0xff]
  %v57 = vld [vmem:[%s3 + $0x80] sm:$0xff]
  %v58 = vld [vmem:[%s3 + $0x88] sm:$0xff]
  %v59 = vld [vmem:[%s3 + $0x90] sm:$0xff]
  %v60 = vld [vmem:[%s3 + $0x98] sm:$0xff]
  %v61 = vld [vmem:[%s3 + $0xa0] sm:$0xff]
  %v62 = vld [vmem:[%s3 + $0xa8] sm:$0xff]
  %v63 = vld [vmem:[%s3 + $0xb0] sm:$0xff]
  %v64 = vld [vmem:[%s3 + $0xb8] sm:$0xff]
  %v65 = vld [vmem:[%s3 + $0xc0] sm:$0xff]
  %v66 = vld [vmem:[%s3 + $0xc8] sm:$0xff]
  %v67 = vld [vmem:[%s3 + $0xd0] sm:$0xff]
  %v68 = vld [vmem:[%s3 + $0xd8] sm:$0xff]
  %v69 = vld [vmem:[%s3 + $0xe0] sm:$0xff]
  %v70 = vld [vmem:[%s3 + $0xe8] sm:$0xff]
  %v71 = vld [vmem:[%s3 + $0xf0] sm:$0xff]
  %v72 = vld [vmem:[%s3 + $0xf8] sm:$0xff]
  %v73 = vld [vmem:[%s3 + $0x100] sm:$0xff]
  %v74 = vld [vmem:[%s3 + $0x108] sm:$0xff]
  %v75 = vld [vmem:[%s3 + $0x110] sm:$0xff]
  %v76 = vld [vmem:[%s3 + $0x118] sm:$0xff]
  %v77 = vld [vmem:[%s3 + $0x120] sm:$0xff]
  %v78 = vld [vmem:[%s3 + $0x128] sm:$0xff]
  %v79 = vld [vmem:[%s3 + $0x130] sm:$0xff]
  %v80 = vld [vmem:[%s3 + $0x138] sm:$0xff]
  %v81 = vld [vmem:[%s3 + $0x140] sm:$0xff]
  %v82 = vld [vmem:[%s3 + $0x148] sm:$0xff]
  %v83 = vld [vmem:[%s3 + $0x150] sm:$0xff]
  %v84 = vld [vmem:[%s3 + $0x158] sm:$0xff]
  %v85 = vld [vmem:[%s3 + $0x160] sm:$0xff]
  %v86 = vld [vmem:[%s3 + $0x168] sm:$0xff]
  %v87 = vld [vmem:[%s3 + $0x170] sm:$0xff]
  %v88 = vld [vmem:[%s3 + $0x178] sm:$0xff]
  %v89 = vld [vmem:[%s3 + $0x180] sm:$0xff]
  %v90 = vld [vmem:[%s3 + $0x188] sm:$0xff]
  %v91 = vld [vmem:[%s3 + $0x190] sm:$0xff]
  %v92 = vld [vmem:[%s3 + $0x198] sm:$0xff]
  %v93 = vld [vmem:[%s3 + $0x1a0] sm:$0xff]
  %v94 = vld [vmem:[%s3 + $0x1a8] sm:$0xff]
  %v95 = vld [vmem:[%s3 + $0x1b0] sm:$0xff]
  %v96 = vld [vmem:[%s3 + $0x1b8] sm:$0xff]
  %v97 = vld [vmem:[%s3 + $0x1c0] sm:$0xff]
  %v98 = vld [vmem:[%s3 + $0x1c8] sm:$0xff]
  %v99 = vld [vmem:[%s3 + $0x1d0] sm:$0xff]
  %v100 = vld [vmem:[%s3 + $0x1d8] sm:$0xff]
  %v101 = vld [vmem:[%s3 + $0x1e0] sm:$0xff]
  %v102 = vld [vmem:[%s3 + $0x1e8] sm:$0xff]
  %v103 = vld [vmem:[%s3 + $0x1f0] sm:$0x1]
  %v104 = vld [vmem:[%s3 + $0x1f1] sm:$0x1]
  %v105 = vld [vmem:[%s3 + $0x1f2] sm:$0x1]
  %v106 = vld [vmem:[%s3 + $0x1f3] sm:$0x1]
  %v107 = vld [vmem:[%s3 + $0x1f4] sm:$0x1]
  %v108 = vld [vmem:[%s3 + $0x1f5] sm:$0x1]
  %v109 = vld [vmem:[%s3 + $0x1f6] sm:$0x1]
  %v110 = vld [vmem:[%s3 + $0x1f7] sm:$0x1]
  %v111 = vlaneseq
  %v112 = vand.u32 %v111, 127
  %v113 = vld [vmem:[%s0] sm:$0xff]
  %v114 = vld [vmem:[%s0 + $0x8] sm:$0xff]
  %v115 = vld [vmem:[%s0 + $0x10] sm:$0xff]
  %v116 = vld [vmem:[%s0 + $0x18] sm:$0xff]
  %vm117 = vcmask 392192
  %v119 = vsel %vm117, %v113, 0
  %v122 = vsel %vm117, %v114, 0
  %v125 = vsel %vm117, %v115, 0
  %v128 = vsel %vm117, %v116, 0
  %130 = vmatprep.subr.mxu0 0.0
  %131 = vmatpush1.msra.mxu0 0.0
  %132 = vmatprep.subr.mxu0 0.0
  %133 = vmatpush1.msra.mxu0 0.0
  %134 = vmatprep.subr.mxu0 0.0
  %135 = vmatpush1.msra.mxu0 0.0
  %136 = vmatprep.subr.mxu0 0.0
  %137 = vmatpush1.msra.mxu0 0.0
  %138 = vmatprep.subr.mxu0 0.0
  %139 = vmatpush1.msra.mxu0 0.0
  %140 = vmatprep.subr.mxu0 0.0
  %141 = vmatpush1.msra.mxu0 0.0
  %142 = vmatprep.subr.mxu0 0.0
  %143 = vmatpush1.msra.mxu0 0.0
  %144 = vmatprep.subr.mxu0 0.0
  %145 = vmatpush1.msra.mxu0 0.0
  %146 = vmatprep.subr.mxu0 0.0
  %147 = vmatpush1.msra.mxu0 0.0
  %148 = vmatprep.subr.mxu0 0.0
  %149 = vmatpush1.msra.mxu0 0.0
  %150 = vmatprep.subr.mxu0 0.0
  %151 = vmatpush1.msra.mxu0 %v46
  %152 = vmatprep.subr.mxu0 0.0
  %153 = vmatpush1.msra.mxu0 %v45
  %154 = vmatprep.subr.mxu0 0.0
  %155 = vmatpush1.msra.mxu0 %v44
  %156 = vmatprep.subr.mxu0 0.0
  %157 = vmatpush1.msra.mxu0 %v43
  %158 = vmatprep.subr.mxu0 0.0
  %159 = vmatpush1.msra.mxu0 %v42
  %160 = vmatprep.subr.mxu0 0.0
  %161 = vmatpush1.msra.mxu0 %v41
  %162 = vmatprep.subr.mxu0 0.0
  %163 = vmatpush2.msra.mxu0 0.0
  %164 = vmatprep.subr.mxu0 0.0
  %165 = vmatpush2.msra.mxu0 0.0
  %166 = vmatprep.subr.mxu0 0.0
  %167 = vmatpush2.msra.mxu0 0.0
  %168 = vmatprep.subr.mxu0 0.0
  %169 = vmatpush2.msra.mxu0 0.0
  %170 = vmatprep.subr.mxu0 0.0
  %171 = vmatpush2.msra.mxu0 0.0
  %172 = vmatprep.subr.mxu0 0.0
  %173 = vmatpush2.msra.mxu0 0.0
  %174 = vmatprep.subr.mxu0 0.0
  %175 = vmatpush2.msra.mxu0 0.0
  %176 = vmatprep.subr.mxu0 0.0
  %177 = vmatpush2.msra.mxu0 0.0
  %178 = vmatprep.subr.mxu0 0.0
  %179 = vmatpush2.msra.mxu0 0.0
  %180 = vmatprep.subr.mxu0 0.0
  %181 = vmatpush2.msra.mxu0 0.0
  %182 = vmatprep.subr.mxu0 0.0
  %183 = vmatpush2.msra.mxu0 0.0
  %184 = vmatprep.subr.mxu0 0.0
  %185 = vmatpush2.msra.mxu0 0.0
  %186 = vmatprep.subr.mxu0 0.0
  %187 = vmatpush2.msra.mxu0 0.0
  %188 = vmatprep.subr.mxu0 0.0
  %189 = vmatpush2.msra.mxu0 0.0
  %190 = vmatprep.subr.mxu0 0.0
  %191 = vmatpush2.msra.mxu0 0.0
  %192 = vmatprep.subr.mxu0 0.0
  %193 = vmatpush2.msra.mxu0 0.0
  %194 = vmatprep.mubr.f32.mxu0 0.0
  %195 = vmatmul.mubr.f32.gmra.mxu0 %v119
  %v196 = vpop.f32.mrf.mxu0
  %v197 = vadd.f32 0.0, %v196
  %v198 = vpop.f32.mrf.mxu0
  %199 = vmatprep.mubr.f32.mxu0 0.0
  %200 = vmatmul.mubr.f32.gmra.mxu0 %v122
  %v201 = vpop.f32.mrf.mxu0
  %v202 = vadd.f32 0.0, %v201
  %v203 = vpop.f32.mrf.mxu0
  %204 = vmatprep.mubr.f32.mxu0 0.0
  %205 = vmatmul.mubr.f32.gmra.mxu0 %v125
  %v206 = vpop.f32.mrf.mxu0
  %v207 = vadd.f32 0.0, %v206
  %v208 = vpop.f32.mrf.mxu0
  %209 = vmatprep.mubr.f32.mxu0 0.0
  %210 = vmatmul.mubr.f32.gmra.mxu0 %v128
  %v211 = vpop.f32.mrf.mxu0
  %v212 = vadd.f32 0.0, %v211
  %v213 = vpop.f32.mrf.mxu0
  %214 = vdwg.mxu0
  %vm215 = vcmask 261120
  %v217 = vsel %vm215, %v197, 0
  %v220 = vsel %vm215, %v202, 0
  %v223 = vsel %vm215, %v207, 0
  %v226 = vsel %vm215, %v212, 0
  %228 = vmatprep.subr.mxu0 0.0
  %229 = vmatpush1.msra.mxu0 0.0
  %230 = vmatprep.subr.mxu0 0.0
  %231 = vmatpush1.msra.mxu0 0.0
  %232 = vmatprep.subr.mxu0 0.0
  %233 = vmatpush1.msra.mxu0 0.0
  %234 = vmatprep.subr.mxu0 0.0
  %235 = vmatpush1.msra.mxu0 0.0
  %236 = vmatprep.subr.mxu0 0.0
  %237 = vmatpush1.msra.mxu0 0.0
  %238 = vmatprep.subr.mxu0 0.0
  %239 = vmatpush1.msra.mxu0 0.0
  %240 = vmatprep.subr.mxu0 0.0
  %241 = vmatpush1.msra.mxu0 0.0
  %242 = vmatprep.subr.mxu0 0.0
  %243 = vmatpush1.msra.mxu0 0.0
  %244 = vmatprep.subr.mxu0 0.0
  %245 = vmatpush1.msra.mxu0 0.0
  %246 = vmatprep.subr.mxu0 0.0
  %247 = vmatpush1.msra.mxu0 0.0
  %248 = vmatprep.subr.mxu0 0.0
  %249 = vmatpush1.msra.mxu0 0.0
  %250 = vmatprep.subr.mxu0 0.0
  %251 = vmatpush1.msra.mxu0 0.0
  %252 = vmatprep.subr.mxu0 0.0
  %253 = vmatpush1.msra.mxu0 %v20
  %254 = vmatprep.subr.mxu0 0.0
  %255 = vmatpush1.msra.mxu0 %v19
  %256 = vmatprep.subr.mxu0 0.0
  %257 = vmatpush1.msra.mxu0 %v18
  %258 = vmatprep.subr.mxu0 0.0
  %259 = vmatpush1.msra.mxu0 %v17
  %260 = vmatprep.subr.mxu0 0.0
  %261 = vmatpush2.msra.mxu0 0.0
  %262 = vmatprep.subr.mxu0 0.0
  %263 = vmatpush2.msra.mxu0 0.0
  %264 = vmatprep.subr.mxu0 0.0
  %265 = vmatpush2.msra.mxu0 0.0
  %266 = vmatprep.subr.mxu0 0.0
  %267 = vmatpush2.msra.mxu0 0.0
  %268 = vmatprep.subr.mxu0 0.0
  %269 = vmatpush2.msra.mxu0 0.0
  %270 = vmatprep.subr.mxu0 0.0
  %271 = vmatpush2.msra.mxu0 0.0
  %272 = vmatprep.subr.mxu0 0.0
  %273 = vmatpush2.msra.mxu0 0.0
  %274 = vmatprep.subr.mxu0 0.0
  %275 = vmatpush2.msra.mxu0 0.0
  %276 = vmatprep.subr.mxu0 0.0
  %277 = vmatpush2.msra.mxu0 0.0
  %278 = vmatprep.subr.mxu0 0.0
  %279 = vmatpush2.msra.mxu0 0.0
  %280 = vmatprep.subr.mxu0 0.0
  %281 = vmatpush2.msra.mxu0 0.0
  %282 = vmatprep.subr.mxu0 0.0
  %283 = vmatpush2.msra.mxu0 0.0
  %284 = vmatprep.subr.mxu0 0.0
  %285 = vmatpush2.msra.mxu0 0.0
  %286 = vmatprep.subr.mxu0 0.0
  %287 = vmatpush2.msra.mxu0 0.0
  %288 = vmatprep.subr.mxu0 0.0
  %289 = vmatpush2.msra.mxu0 0.0
  %290 = vmatprep.subr.mxu0 0.0
  %291 = vmatpush2.msra.mxu0 0.0
  %292 = vmatprep.mubr.f32.mxu0 0.0
  %293 = vmatmul.mubr.f32.gmra.mxu0 %v217
  %v294 = vpop.f32.mrf.mxu0
  %v295 = vadd.f32 0.0, %v294
  %v296 = vpop.f32.mrf.mxu0
  %297 = vmatprep.mubr.f32.mxu0 0.0
  %298 = vmatmul.mubr.f32.gmra.mxu0 %v220
  %v299 = vpop.f32.mrf.mxu0
  %v300 = vadd.f32 0.0, %v299
  %v301 = vpop.f32.mrf.mxu0
  %302 = vmatprep.mubr.f32.mxu0 0.0
  %303 = vmatmul.mubr.f32.gmra.mxu0 %v223
  %v304 = vpop.f32.mrf.mxu0
  %v305 = vadd.f32 0.0, %v304
  %v306 = vpop.f32.mrf.mxu0
  %307 = vmatprep.mubr.f32.mxu0 0.0
  %308 = vmatmul.mubr.f32.gmra.mxu0 %v226
  %v309 = vpop.f32.mrf.mxu0
  %v310 = vadd.f32 0.0, %v309
  %v311 = vpop.f32.mrf.mxu0
  %312 = vdwg.mxu0
  %v313 = vmul.f32 %v295, 2.0
  %v314 = vmul.f32 %v300, 2.0
  %v315 = vmul.f32 %v305, 2.0
  %v316 = vmul.f32 %v310, 2.0
  %v317 = vlaneseq
  %v318 = vshrl.u32 %v317, 7
  %v319 = vsub.s32 0, %v318
  %v320 = vrot.slane %v37, %v319
  %v321 = vsub.f32 %v320, %v313
  %v322 = vsub.f32 %v320, %v314
  %v323 = vsub.f32 %v320, %v315
  %v324 = vsub.f32 %v320, %v316
  %325 = vmin.xlane.f32.xlu0 %v321
  %v326 = vpop.xlane.xlu0 %325
  %327 = vmin.xlane.f32.xlu0 %v322
  %v328 = vpop.xlane.xlu0 %327
  %329 = vmin.xlane.f32.xlu0 %v323
  %v330 = vpop.xlane.xlu0 %329
  %331 = vmin.xlane.f32.xlu0 %v324
  %v332 = vpop.xlane.xlu0 %331
  %vm333 = vcmp.le.f32.partialorder %v321, %v326
  %vm334 = vcmp.le.f32.partialorder %v322, %v328
  %vm335 = vcmp.le.f32.partialorder %v323, %v330
  %vm336 = vcmp.le.f32.partialorder %v324, %v332
  %v337 = vsel %vm333, %v112, 128
  %v338 = vsel %vm334, %v112, 128
  %v339 = vsel %vm335, %v112, 128
  %v340 = vsel %vm336, %v112, 128
  %v341 = vand.u32 %v337, 65535
  %v342 = vshra.s32 %v337, 16
  %v343 = vcvt.s32.f32 %v341
  %v344 = vcvt.s32.f32 %v342
  %345 = vmin.xlane.f32.xlu0 %v344
  %v346 = vpop.xlane.xlu0 %345
  %vm347 = vcmp.eq.f32.partialorder %v344, %v346
  %v348 = vsel %vm347, %v343, inf
  %349 = vmin.xlane.f32.xlu0 %v348
  %v350 = vpop.xlane.xlu0 %349
  %v351 = vcvt.f32.s32 %v350
  %v352 = vcvt.f32.s32 %v346
  %v353 = vshll.u32 %v352, 16
  %v354 = vadd.s32 %v353, %v351
  %v355 = vand.u32 %v338, 65535
  %v356 = vshra.s32 %v338, 16
  %v357 = vcvt.s32.f32 %v355
  %v358 = vcvt.s32.f32 %v356
  %359 = vmin.xlane.f32.xlu0 %v358
  %v360 = vpop.xlane.xlu0 %359
  %vm361 = vcmp.eq.f32.partialorder %v358, %v360
  %v362 = vsel %vm361, %v357, inf
  %363 = vmin.xlane.f32.xlu0 %v362
  %v364 = vpop.xlane.xlu0 %363
  %v365 = vcvt.f32.s32 %v364
  %v366 = vcvt.f32.s32 %v360
  %v367 = vshll.u32 %v366, 16
  %v368 = vadd.s32 %v367, %v365
  %v369 = vand.u32 %v339, 65535
  %v370 = vshra.s32 %v339, 16
  %v371 = vcvt.s32.f32 %v369
  %v372 = vcvt.s32.f32 %v370
  %373 = vmin.xlane.f32.xlu0 %v372
  %v374 = vpop.xlane.xlu0 %373
  %vm375 = vcmp.eq.f32.partialorder %v372, %v374
  %v376 = vsel %vm375, %v371, inf
  %377 = vmin.xlane.f32.xlu0 %v376
  %v378 = vpop.xlane.xlu0 %377
  %v379 = vcvt.f32.s32 %v378
  %v380 = vcvt.f32.s32 %v374
  %v381 = vshll.u32 %v380, 16
  %v382 = vadd.s32 %v381, %v379
  %v383 = vand.u32 %v340, 65535
  %v384 = vshra.s32 %v340, 16
  %v385 = vcvt.s32.f32 %v383
  %v386 = vcvt.s32.f32 %v384
  %387 = vmin.xlane.f32.xlu0 %v386
  %v388 = vpop.xlane.xlu0 %387
  %vm389 = vcmp.eq.f32.partialorder %v386, %v388
  %v390 = vsel %vm389, %v385, inf
  %391 = vmin.xlane.f32.xlu0 %v390
  %v392 = vpop.xlane.xlu0 %391
  %v393 = vcvt.f32.s32 %v392
  %v394 = vcvt.f32.s32 %v388
  %v395 = vshll.u32 %v394, 16
  %v396 = vadd.s32 %v395, %v393
  %v397 = vld [vmem:[%s1] sm:$0xff]
  %v398 = vld [vmem:[%s1 + $0x8] sm:$0xff]
  %v399 = vld [vmem:[%s1 + $0x10] sm:$0xff]
  %v400 = vld [vmem:[%s1 + $0x18] sm:$0xff]
  %vm401 = vcmp.gt.f32.partialorder %v397, 0.5
  %vm402 = vcmp.gt.f32.partialorder %v398, 0.5
  %vm403 = vcmp.gt.f32.partialorder %v399, 0.5
  %vm404 = vcmp.gt.f32.partialorder %v400, 0.5
  %v405 = vsel %vm401, 64, %v354
  %v406 = vsel %vm402, 64, %v368
  %v407 = vsel %vm403, 64, %v382
  %v408 = vsel %vm404, 64, %v396
  %409 = vset.pattern.permute.xlu0 0
  %410 = vperm.xlu0 %409, %v405
  %v411 = vpop.permute.xlu0 %410
  %412 = vset.pattern.permute.xlu0 0
  %413 = vperm.xlu0 %412, %v406
  %v414 = vpop.permute.xlu0 %413
  %415 = vset.pattern.permute.xlu0 0
  %416 = vperm.xlu0 %415, %v407
  %v417 = vpop.permute.xlu0 %416
  %418 = vset.pattern.permute.xlu0 0
  %419 = vperm.xlu0 %418, %v408
  %v420 = vpop.permute.xlu0 %419
  %vm421 = vcmp.eq.s32.totalorder %v411, %v112
  %vm422 = vcmp.eq.s32.totalorder %v414, %v112
  %vm423 = vcmp.eq.s32.totalorder %v417, %v112
  %vm424 = vcmp.eq.s32.totalorder %v420, %v112
  %v425 = vsel %vm421, 1, 0
  %v426 = vsel %vm422, 1, 0
  %v427 = vsel %vm423, 1, 0
  %v428 = vsel %vm424, 1, 0
  %v429 = vcvt.s32.f32 %v425
  %v430 = vcvt.s32.f32 %v426
  %v431 = vcvt.s32.f32 %v427
  %v432 = vcvt.s32.f32 %v428
  %433 = vmatprep.subr.mxu0 0.0
  %434 = vmatpush1.msra.mxu0 %v62
  %435 = vmatprep.subr.mxu0 0.0
  %436 = vmatpush1.msra.mxu0 %v61
  %437 = vmatprep.subr.mxu0 0.0
  %438 = vmatpush1.msra.mxu0 %v60
  %439 = vmatprep.subr.mxu0 0.0
  %440 = vmatpush1.msra.mxu0 %v59
  %441 = vmatprep.subr.mxu0 0.0
  %442 = vmatpush1.msra.mxu0 %v58
  %443 = vmatprep.subr.mxu0 0.0
  %444 = vmatpush1.msra.mxu0 %v57
  %445 = vmatprep.subr.mxu0 0.0
  %446 = vmatpush1.msra.mxu0 %v56
  %447 = vmatprep.subr.mxu0 0.0
  %448 = vmatpush1.msra.mxu0 %v55
  %449 = vmatprep.subr.mxu0 0.0
  %450 = vmatpush1.msra.mxu0 %v54
  %451 = vmatprep.subr.mxu0 0.0
  %452 = vmatpush1.msra.mxu0 %v53
  %453 = vmatprep.subr.mxu0 0.0
  %454 = vmatpush1.msra.mxu0 %v52
  %455 = vmatprep.subr.mxu0 0.0
  %456 = vmatpush1.msra.mxu0 %v51
  %457 = vmatprep.subr.mxu0 0.0
  %458 = vmatpush1.msra.mxu0 %v50
  %459 = vmatprep.subr.mxu0 0.0
  %460 = vmatpush1.msra.mxu0 %v49
  %461 = vmatprep.subr.mxu0 0.0
  %462 = vmatpush1.msra.mxu0 %v48
  %463 = vmatprep.subr.mxu0 0.0
  %464 = vmatpush1.msra.mxu0 %v47
  %465 = vmatprep.subr.mxu0 0.0
  %466 = vmatpush2.msra.mxu0 0.0
  %467 = vmatprep.subr.mxu0 0.0
  %468 = vmatpush2.msra.mxu0 0.0
  %469 = vmatprep.subr.mxu0 0.0
  %470 = vmatpush2.msra.mxu0 0.0
  %471 = vmatprep.subr.mxu0 0.0
  %472 = vmatpush2.msra.mxu0 0.0
  %473 = vmatprep.subr.mxu0 0.0
  %474 = vmatpush2.msra.mxu0 0.0
  %475 = vmatprep.subr.mxu0 0.0
  %476 = vmatpush2.msra.mxu0 0.0
  %477 = vmatprep.subr.mxu0 0.0
  %478 = vmatpush2.msra.mxu0 0.0
  %479 = vmatprep.subr.mxu0 0.0
  %480 = vmatpush2.msra.mxu0 0.0
  %481 = vmatprep.subr.mxu0 0.0
  %482 = vmatpush2.msra.mxu0 0.0
  %483 = vmatprep.subr.mxu0 0.0
  %484 = vmatpush2.msra.mxu0 0.0
  %485 = vmatprep.subr.mxu0 0.0
  %486 = vmatpush2.msra.mxu0 0.0
  %487 = vmatprep.subr.mxu0 0.0
  %488 = vmatpush2.msra.mxu0 0.0
  %489 = vmatprep.subr.mxu0 0.0
  %490 = vmatpush2.msra.mxu0 0.0
  %491 = vmatprep.subr.mxu0 0.0
  %492 = vmatpush2.msra.mxu0 0.0
  %493 = vmatprep.subr.mxu0 0.0
  %494 = vmatpush2.msra.mxu0 0.0
  %495 = vmatprep.subr.mxu0 0.0
  %496 = vmatpush2.msra.mxu0 0.0
  %497 = vmatprep.mubr.f32.mxu0 0.0
  %498 = vmatmul.mubr.f32.gmra.mxu0 %v429
  %v499 = vpop.f32.mrf.mxu0
  %v500 = vadd.f32 %v63, %v499
  %v501 = vpop.f32.mrf.mxu0
  %502 = vmatprep.mubr.f32.mxu0 0.0
  %503 = vmatmul.mubr.f32.gmra.mxu0 %v430
  %v504 = vpop.f32.mrf.mxu0
  %v505 = vadd.f32 %v64, %v504
  %v506 = vpop.f32.mrf.mxu0
  %507 = vmatprep.mubr.f32.mxu0 0.0
  %508 = vmatmul.mubr.f32.gmra.mxu0 %v431
  %v509 = vpop.f32.mrf.mxu0
  %v510 = vadd.f32 %v65, %v509
  %v511 = vpop.f32.mrf.mxu0
  %512 = vmatprep.mubr.f32.mxu0 0.0
  %513 = vmatmul.mubr.f32.gmra.mxu0 %v432
  %v514 = vpop.f32.mrf.mxu0
  %v515 = vadd.f32 %v66, %v514
  %v516 = vpop.f32.mrf.mxu0
  %517 = vdwg.mxu0
  %v518 = vsel %vm215, %v500, 0.0
  %519 = vadd.xlane.f32.xlu0 %v518
  %v520 = vpop.xlane.xlu0 %519
  %v521 = vsel %vm215, %v505, 0.0
  %522 = vadd.xlane.f32.xlu0 %v521
  %v523 = vpop.xlane.xlu0 %522
  %v524 = vsel %vm215, %v510, 0.0
  %525 = vadd.xlane.f32.xlu0 %v524
  %v526 = vpop.xlane.xlu0 %525
  %v527 = vsel %vm215, %v515, 0.0
  %528 = vadd.xlane.f32.xlu0 %v527
  %v529 = vpop.xlane.xlu0 %528
  %v530 = vrcp.pop 32.0
  %v531 = vmul.f32 %v520, %v530
  %v532 = vmul.f32 %v523, %v530
  %v533 = vmul.f32 %v526, %v530
  %v534 = vmul.f32 %v529, %v530
  %v535 = vsub.f32 %v500, %v531
  %v536 = vsub.f32 %v505, %v532
  %v537 = vsub.f32 %v510, %v533
  %v538 = vsub.f32 %v515, %v534
  %v539 = vmul.f32 %v535, %v535
  %v540 = vmul.f32 %v536, %v536
  %v541 = vmul.f32 %v537, %v537
  %v542 = vmul.f32 %v538, %v538
  %v543 = vsel %vm215, %v539, 0.0
  %544 = vadd.xlane.f32.xlu0 %v543
  %v545 = vpop.xlane.xlu0 %544
  %v546 = vsel %vm215, %v540, 0.0
  %547 = vadd.xlane.f32.xlu0 %v546
  %v548 = vpop.xlane.xlu0 %547
  %v549 = vsel %vm215, %v541, 0.0
  %550 = vadd.xlane.f32.xlu0 %v549
  %v551 = vpop.xlane.xlu0 %550
  %v552 = vsel %vm215, %v542, 0.0
  %553 = vadd.xlane.f32.xlu0 %v552
  %v554 = vpop.xlane.xlu0 %553
  %v555 = vmul.f32 %v545, %v530
  %v556 = vmul.f32 %v548, %v530
  %v557 = vmul.f32 %v551, %v530
  %v558 = vmul.f32 %v554, %v530
  %v559 = vadd.f32 %v555, 1e-05
  %v560 = vadd.f32 %v556, 1e-05
  %v561 = vadd.f32 %v557, 1e-05
  %v562 = vadd.f32 %v558, 1e-05
  %v563 = vrsqrt.pop %v559
  %v564 = vrsqrt.pop %v560
  %v565 = vrsqrt.pop %v561
  %v566 = vrsqrt.pop %v562
  %v567 = vmul.f32 %v535, %v563
  %v568 = vmul.f32 %v536, %v564
  %v569 = vmul.f32 %v537, %v565
  %v570 = vmul.f32 %v538, %v566
  %v571 = vlaneseq
  %v572 = vshrl.u32 %v571, 7
  %v573 = vsub.s32 0, %v572
  %v574 = vrot.slane %v103, %v573
  %v575 = vmul.f32 %v567, %v574
  %v576 = vmul.f32 %v568, %v574
  %v577 = vmul.f32 %v569, %v574
  %v578 = vmul.f32 %v570, %v574
  %v579 = vlaneseq
  %v580 = vshrl.u32 %v579, 7
  %v581 = vsub.s32 0, %v580
  %v582 = vrot.slane %v104, %v581
  %v583 = vadd.f32 %v575, %v582
  %v584 = vadd.f32 %v576, %v582
  %v585 = vadd.f32 %v577, %v582
  %v586 = vadd.f32 %v578, %v582
  %v587 = vlaneseq
  %v588 = vshrl.u32 %v587, 7
  %v589 = vsub.s32 0, %v588
  %v590 = vrot.slane %v38, %v589
  %v592 = vsel %vm215, %v583, 0
  %v595 = vsel %vm215, %v584, 0
  %v598 = vsel %vm215, %v585, 0
  %v601 = vsel %vm215, %v586, 0
  %603 = vmatprep.subr.mxu0 0.0
  %604 = vmatpush1.msra.mxu0 0.0
  %605 = vmatprep.subr.mxu0 0.0
  %606 = vmatpush1.msra.mxu0 0.0
  %607 = vmatprep.subr.mxu0 0.0
  %608 = vmatpush1.msra.mxu0 0.0
  %609 = vmatprep.subr.mxu0 0.0
  %610 = vmatpush1.msra.mxu0 0.0
  %611 = vmatprep.subr.mxu0 0.0
  %612 = vmatpush1.msra.mxu0 0.0
  %613 = vmatprep.subr.mxu0 0.0
  %614 = vmatpush1.msra.mxu0 0.0
  %615 = vmatprep.subr.mxu0 0.0
  %616 = vmatpush1.msra.mxu0 0.0
  %617 = vmatprep.subr.mxu0 0.0
  %618 = vmatpush1.msra.mxu0 0.0
  %619 = vmatprep.subr.mxu0 0.0
  %620 = vmatpush1.msra.mxu0 0.0
  %621 = vmatprep.subr.mxu0 0.0
  %622 = vmatpush1.msra.mxu0 0.0
  %623 = vmatprep.subr.mxu0 0.0
  %624 = vmatpush1.msra.mxu0 0.0
  %625 = vmatprep.subr.mxu0 0.0
  %626 = vmatpush1.msra.mxu0 0.0
  %627 = vmatprep.subr.mxu0 0.0
  %628 = vmatpush1.msra.mxu0 %v24
  %629 = vmatprep.subr.mxu0 0.0
  %630 = vmatpush1.msra.mxu0 %v23
  %631 = vmatprep.subr.mxu0 0.0
  %632 = vmatpush1.msra.mxu0 %v22
  %633 = vmatprep.subr.mxu0 0.0
  %634 = vmatpush1.msra.mxu0 %v21
  %635 = vmatprep.subr.mxu0 0.0
  %636 = vmatpush2.msra.mxu0 0.0
  %637 = vmatprep.subr.mxu0 0.0
  %638 = vmatpush2.msra.mxu0 0.0
  %639 = vmatprep.subr.mxu0 0.0
  %640 = vmatpush2.msra.mxu0 0.0
  %641 = vmatprep.subr.mxu0 0.0
  %642 = vmatpush2.msra.mxu0 0.0
  %643 = vmatprep.subr.mxu0 0.0
  %644 = vmatpush2.msra.mxu0 0.0
  %645 = vmatprep.subr.mxu0 0.0
  %646 = vmatpush2.msra.mxu0 0.0
  %647 = vmatprep.subr.mxu0 0.0
  %648 = vmatpush2.msra.mxu0 0.0
  %649 = vmatprep.subr.mxu0 0.0
  %650 = vmatpush2.msra.mxu0 0.0
  %651 = vmatprep.subr.mxu0 0.0
  %652 = vmatpush2.msra.mxu0 0.0
  %653 = vmatprep.subr.mxu0 0.0
  %654 = vmatpush2.msra.mxu0 0.0
  %655 = vmatprep.subr.mxu0 0.0
  %656 = vmatpush2.msra.mxu0 0.0
  %657 = vmatprep.subr.mxu0 0.0
  %658 = vmatpush2.msra.mxu0 0.0
  %659 = vmatprep.subr.mxu0 0.0
  %660 = vmatpush2.msra.mxu0 0.0
  %661 = vmatprep.subr.mxu0 0.0
  %662 = vmatpush2.msra.mxu0 0.0
  %663 = vmatprep.subr.mxu0 0.0
  %664 = vmatpush2.msra.mxu0 0.0
  %665 = vmatprep.subr.mxu0 0.0
  %666 = vmatpush2.msra.mxu0 0.0
  %667 = vmatprep.mubr.f32.mxu0 0.0
  %668 = vmatmul.mubr.f32.gmra.mxu0 %v592
  %v669 = vpop.f32.mrf.mxu0
  %v670 = vadd.f32 %v590, %v669
  %v671 = vpop.f32.mrf.mxu0
  %672 = vmatprep.mubr.f32.mxu0 0.0
  %673 = vmatmul.mubr.f32.gmra.mxu0 %v595
  %v674 = vpop.f32.mrf.mxu0
  %v675 = vadd.f32 %v590, %v674
  %v676 = vpop.f32.mrf.mxu0
  %677 = vmatprep.mubr.f32.mxu0 0.0
  %678 = vmatmul.mubr.f32.gmra.mxu0 %v598
  %v679 = vpop.f32.mrf.mxu0
  %v680 = vadd.f32 %v590, %v679
  %v681 = vpop.f32.mrf.mxu0
  %682 = vmatprep.mubr.f32.mxu0 0.0
  %683 = vmatmul.mubr.f32.gmra.mxu0 %v601
  %v684 = vpop.f32.mrf.mxu0
  %v685 = vadd.f32 %v590, %v684
  %v686 = vpop.f32.mrf.mxu0
  %687 = vdwg.mxu0
  %704 = vrot.lane.b32.xlu0 %v87, 32
  %v705 = vpop.permute.xlu0 %704
  %706 = vrot.lane.b32.xlu0 %v88, 32
  %v707 = vpop.permute.xlu0 %706
  %708 = vrot.lane.b32.xlu0 %v89, 32
  %v709 = vpop.permute.xlu0 %708
  %710 = vrot.lane.b32.xlu0 %v90, 32
  %v711 = vpop.permute.xlu0 %710
  %712 = vrot.lane.b32.xlu0 %v91, 32
  %v713 = vpop.permute.xlu0 %712
  %714 = vrot.lane.b32.xlu0 %v92, 32
  %v715 = vpop.permute.xlu0 %714
  %716 = vrot.lane.b32.xlu0 %v93, 32
  %v717 = vpop.permute.xlu0 %716
  %718 = vrot.lane.b32.xlu0 %v94, 32
  %v719 = vpop.permute.xlu0 %718
  %720 = vrot.lane.b32.xlu0 %v95, 32
  %v721 = vpop.permute.xlu0 %720
  %722 = vrot.lane.b32.xlu0 %v96, 32
  %v723 = vpop.permute.xlu0 %722
  %724 = vrot.lane.b32.xlu0 %v97, 32
  %v725 = vpop.permute.xlu0 %724
  %726 = vrot.lane.b32.xlu0 %v98, 32
  %v727 = vpop.permute.xlu0 %726
  %728 = vrot.lane.b32.xlu0 %v99, 32
  %v729 = vpop.permute.xlu0 %728
  %730 = vrot.lane.b32.xlu0 %v100, 32
  %v731 = vpop.permute.xlu0 %730
  %732 = vrot.lane.b32.xlu0 %v101, 32
  %v733 = vpop.permute.xlu0 %732
  %734 = vrot.lane.b32.xlu0 %v102, 32
  %v735 = vpop.permute.xlu0 %734
  %v752 = vmul.f32 %v670, %v705
  %v753 = vmul.f32 %v675, %v707
  %v754 = vmul.f32 %v680, %v709
  %v755 = vmul.f32 %v685, %v711
  %v756 = vmul.f32 %v670, %v713
  %v757 = vmul.f32 %v675, %v715
  %v758 = vmul.f32 %v680, %v717
  %v759 = vmul.f32 %v685, %v719
  %v760 = vmul.f32 %v670, %v721
  %v761 = vmul.f32 %v675, %v723
  %v762 = vmul.f32 %v680, %v725
  %v763 = vmul.f32 %v685, %v727
  %v764 = vmul.f32 %v670, %v729
  %v765 = vmul.f32 %v675, %v731
  %v766 = vmul.f32 %v680, %v733
  %v767 = vmul.f32 %v685, %v735
  %784 = vrot.lane.b32.xlu0 %v752, 96
  %v785 = vpop.permute.xlu0 %784
  %786 = vrot.lane.b32.xlu0 %v753, 96
  %v787 = vpop.permute.xlu0 %786
  %788 = vrot.lane.b32.xlu0 %v754, 96
  %v789 = vpop.permute.xlu0 %788
  %790 = vrot.lane.b32.xlu0 %v755, 96
  %v791 = vpop.permute.xlu0 %790
  %792 = vrot.lane.b32.xlu0 %v756, 96
  %v793 = vpop.permute.xlu0 %792
  %794 = vrot.lane.b32.xlu0 %v757, 96
  %v795 = vpop.permute.xlu0 %794
  %796 = vrot.lane.b32.xlu0 %v758, 96
  %v797 = vpop.permute.xlu0 %796
  %798 = vrot.lane.b32.xlu0 %v759, 96
  %v799 = vpop.permute.xlu0 %798
  %800 = vrot.lane.b32.xlu0 %v760, 96
  %v801 = vpop.permute.xlu0 %800
  %802 = vrot.lane.b32.xlu0 %v761, 96
  %v803 = vpop.permute.xlu0 %802
  %804 = vrot.lane.b32.xlu0 %v762, 96
  %v805 = vpop.permute.xlu0 %804
  %806 = vrot.lane.b32.xlu0 %v763, 96
  %v807 = vpop.permute.xlu0 %806
  %808 = vrot.lane.b32.xlu0 %v764, 96
  %v809 = vpop.permute.xlu0 %808
  %810 = vrot.lane.b32.xlu0 %v765, 96
  %v811 = vpop.permute.xlu0 %810
  %812 = vrot.lane.b32.xlu0 %v766, 96
  %v813 = vpop.permute.xlu0 %812
  %814 = vrot.lane.b32.xlu0 %v767, 96
  %v815 = vpop.permute.xlu0 %814
  %v817 = vsel %vm215, %v670, 0
  %v820 = vsel %vm215, %v675, 0
  %v823 = vsel %vm215, %v680, 0
  %v826 = vsel %vm215, %v685, 0
  %v828 = vsel %vm215, %v785, 0
  %v830 = vsel %vm215, %v787, 0
  %v832 = vsel %vm215, %v789, 0
  %v834 = vsel %vm215, %v791, 0
  %v836 = vsel %vm215, %v793, 0
  %v838 = vsel %vm215, %v795, 0
  %v840 = vsel %vm215, %v797, 0
  %v842 = vsel %vm215, %v799, 0
  %v844 = vsel %vm215, %v801, 0
  %v846 = vsel %vm215, %v803, 0
  %v848 = vsel %vm215, %v805, 0
  %v850 = vsel %vm215, %v807, 0
  %v852 = vsel %vm215, %v809, 0
  %v854 = vsel %vm215, %v811, 0
  %v856 = vsel %vm215, %v813, 0
  %v858 = vsel %vm215, %v815, 0
  %860 = vmatprep.subr.mxu0 0.0
  %861 = vmatpush1.xpose.msra.mxu0 %v858
  %862 = vmatprep.subr.mxu0 0.0
  %863 = vmatpush1.xpose.msra.mxu0 %v856
  %864 = vmatprep.subr.mxu0 0.0
  %865 = vmatpush1.xpose.msra.mxu0 %v854
  %866 = vmatprep.subr.mxu0 0.0
  %867 = vmatpush1.xpose.msra.mxu0 %v852
  %868 = vmatprep.subr.mxu0 0.0
  %869 = vmatpush1.xpose.msra.mxu0 %v850
  %870 = vmatprep.subr.mxu0 0.0
  %871 = vmatpush1.xpose.msra.mxu0 %v848
  %872 = vmatprep.subr.mxu0 0.0
  %873 = vmatpush1.xpose.msra.mxu0 %v846
  %874 = vmatprep.subr.mxu0 0.0
  %875 = vmatpush1.xpose.msra.mxu0 %v844
  %876 = vmatprep.subr.mxu0 0.0
  %877 = vmatpush1.xpose.msra.mxu0 %v842
  %878 = vmatprep.subr.mxu0 0.0
  %879 = vmatpush1.xpose.msra.mxu0 %v840
  %880 = vmatprep.subr.mxu0 0.0
  %881 = vmatpush1.xpose.msra.mxu0 %v838
  %882 = vmatprep.subr.mxu0 0.0
  %883 = vmatpush1.xpose.msra.mxu0 %v836
  %884 = vmatprep.subr.mxu0 0.0
  %885 = vmatpush1.xpose.msra.mxu0 %v834
  %886 = vmatprep.subr.mxu0 0.0
  %887 = vmatpush1.xpose.msra.mxu0 %v832
  %888 = vmatprep.subr.mxu0 0.0
  %889 = vmatpush1.xpose.msra.mxu0 %v830
  %890 = vmatprep.subr.mxu0 0.0
  %891 = vmatpush1.xpose.msra.mxu0 %v828
  %892 = vmatprep.subr.mxu0 0.0
  %893 = vmatpush2.xpose.msra.mxu0 0.0
  %894 = vmatprep.subr.mxu0 0.0
  %895 = vmatpush2.xpose.msra.mxu0 0.0
  %896 = vmatprep.subr.mxu0 0.0
  %897 = vmatpush2.xpose.msra.mxu0 0.0
  %898 = vmatprep.subr.mxu0 0.0
  %899 = vmatpush2.xpose.msra.mxu0 0.0
  %900 = vmatprep.subr.mxu0 0.0
  %901 = vmatpush2.xpose.msra.mxu0 0.0
  %902 = vmatprep.subr.mxu0 0.0
  %903 = vmatpush2.xpose.msra.mxu0 0.0
  %904 = vmatprep.subr.mxu0 0.0
  %905 = vmatpush2.xpose.msra.mxu0 0.0
  %906 = vmatprep.subr.mxu0 0.0
  %907 = vmatpush2.xpose.msra.mxu0 0.0
  %908 = vmatprep.subr.mxu0 0.0
  %909 = vmatpush2.xpose.msra.mxu0 0.0
  %910 = vmatprep.subr.mxu0 0.0
  %911 = vmatpush2.xpose.msra.mxu0 0.0
  %912 = vmatprep.subr.mxu0 0.0
  %913 = vmatpush2.xpose.msra.mxu0 0.0
  %914 = vmatprep.subr.mxu0 0.0
  %915 = vmatpush2.xpose.msra.mxu0 0.0
  %916 = vmatprep.subr.mxu0 0.0
  %917 = vmatpush2.xpose.msra.mxu0 0.0
  %918 = vmatprep.subr.mxu0 0.0
  %919 = vmatpush2.xpose.msra.mxu0 0.0
  %920 = vmatprep.subr.mxu0 0.0
  %921 = vmatpush2.xpose.msra.mxu0 0.0
  %922 = vmatprep.subr.mxu0 0.0
  %923 = vmatpush2.xpose.msra.mxu0 0.0
  %924 = vmatprep.mubr.f32.mxu0 0.0
  %925 = vmatmul.mubr.f32.gmra.mxu0 %v817
  %v926 = vpop.f32.mrf.mxu0
  %v927 = vadd.f32 0.0, %v926
  %v928 = vpop.f32.mrf.mxu0
  %929 = vmatprep.mubr.f32.mxu0 0.0
  %930 = vmatmul.mubr.f32.gmra.mxu0 %v820
  %v931 = vpop.f32.mrf.mxu0
  %v932 = vadd.f32 0.0, %v931
  %v933 = vpop.f32.mrf.mxu0
  %934 = vmatprep.mubr.f32.mxu0 0.0
  %935 = vmatmul.mubr.f32.gmra.mxu0 %v823
  %v936 = vpop.f32.mrf.mxu0
  %v937 = vadd.f32 0.0, %v936
  %v938 = vpop.f32.mrf.mxu0
  %939 = vmatprep.mubr.f32.mxu0 0.0
  %940 = vmatmul.mubr.f32.gmra.mxu0 %v826
  %v941 = vpop.f32.mrf.mxu0
  %v942 = vadd.f32 0.0, %v941
  %v943 = vpop.f32.mrf.mxu0
  %944 = vdwg.mxu0
  %v945 = vmul.f32 %v927, 0.35355338
  %v946 = vmul.f32 %v932, 0.35355338
  %v947 = vmul.f32 %v937, 0.35355338
  %v948 = vmul.f32 %v942, 0.35355338
  %v949 = vadd.f32 %v945, %v33
  %v950 = vadd.f32 %v946, %v34
  %v951 = vadd.f32 %v947, %v35
  %v952 = vadd.f32 %v948, %v36
  %953 = vmax.xlane.f32.xlu0 %v949
  %v954 = vpop.xlane.xlu0 %953
  %955 = vmax.xlane.f32.xlu0 %v950
  %v956 = vpop.xlane.xlu0 %955
  %957 = vmax.xlane.f32.xlu0 %v951
  %v958 = vpop.xlane.xlu0 %957
  %959 = vmax.xlane.f32.xlu0 %v952
  %v960 = vpop.xlane.xlu0 %959
  %v961 = vsub.f32 %v949, %v954
  %v962 = vsub.f32 %v950, %v956
  %v963 = vsub.f32 %v951, %v958
  %v964 = vsub.f32 %v952, %v960
  %v965 = vmul.f32 %v961, 1.442695
  %v966 = vpow.pop %v965
  %v967 = vmul.f32 %v962, 1.442695
  %v968 = vpow.pop %v967
  %v969 = vmul.f32 %v963, 1.442695
  %v970 = vpow.pop %v969
  %v971 = vmul.f32 %v964, 1.442695
  %v972 = vpow.pop %v971
  %973 = vrot.lane.b32.xlu0 %v87, 64
  %v974 = vpop.permute.xlu0 %973
  %975 = vrot.lane.b32.xlu0 %v88, 64
  %v976 = vpop.permute.xlu0 %975
  %977 = vrot.lane.b32.xlu0 %v89, 64
  %v978 = vpop.permute.xlu0 %977
  %979 = vrot.lane.b32.xlu0 %v90, 64
  %v980 = vpop.permute.xlu0 %979
  %981 = vrot.lane.b32.xlu0 %v91, 64
  %v982 = vpop.permute.xlu0 %981
  %983 = vrot.lane.b32.xlu0 %v92, 64
  %v984 = vpop.permute.xlu0 %983
  %985 = vrot.lane.b32.xlu0 %v93, 64
  %v986 = vpop.permute.xlu0 %985
  %987 = vrot.lane.b32.xlu0 %v94, 64
  %v988 = vpop.permute.xlu0 %987
  %989 = vrot.lane.b32.xlu0 %v95, 64
  %v990 = vpop.permute.xlu0 %989
  %991 = vrot.lane.b32.xlu0 %v96, 64
  %v992 = vpop.permute.xlu0 %991
  %993 = vrot.lane.b32.xlu0 %v97, 64
  %v994 = vpop.permute.xlu0 %993
  %995 = vrot.lane.b32.xlu0 %v98, 64
  %v996 = vpop.permute.xlu0 %995
  %997 = vrot.lane.b32.xlu0 %v99, 64
  %v998 = vpop.permute.xlu0 %997
  %999 = vrot.lane.b32.xlu0 %v100, 64
  %v1000 = vpop.permute.xlu0 %999
  %1001 = vrot.lane.b32.xlu0 %v101, 64
  %v1002 = vpop.permute.xlu0 %1001
  %1003 = vrot.lane.b32.xlu0 %v102, 64
  %v1004 = vpop.permute.xlu0 %1003
  %v1021 = vmul.f32 %v670, %v974
  %v1022 = vmul.f32 %v675, %v976
  %v1023 = vmul.f32 %v680, %v978
  %v1024 = vmul.f32 %v685, %v980
  %v1025 = vmul.f32 %v670, %v982
  %v1026 = vmul.f32 %v675, %v984
  %v1027 = vmul.f32 %v680, %v986
  %v1028 = vmul.f32 %v685, %v988
  %v1029 = vmul.f32 %v670, %v990
  %v1030 = vmul.f32 %v675, %v992
  %v1031 = vmul.f32 %v680, %v994
  %v1032 = vmul.f32 %v685, %v996
  %v1033 = vmul.f32 %v670, %v998
  %v1034 = vmul.f32 %v675, %v1000
  %v1035 = vmul.f32 %v680, %v1002
  %v1036 = vmul.f32 %v685, %v1004
  %1053 = vrot.lane.b32.xlu0 %v1021, 64
  %v1054 = vpop.permute.xlu0 %1053
  %1055 = vrot.lane.b32.xlu0 %v1022, 64
  %v1056 = vpop.permute.xlu0 %1055
  %1057 = vrot.lane.b32.xlu0 %v1023, 64
  %v1058 = vpop.permute.xlu0 %1057
  %1059 = vrot.lane.b32.xlu0 %v1024, 64
  %v1060 = vpop.permute.xlu0 %1059
  %1061 = vrot.lane.b32.xlu0 %v1025, 64
  %v1062 = vpop.permute.xlu0 %1061
  %1063 = vrot.lane.b32.xlu0 %v1026, 64
  %v1064 = vpop.permute.xlu0 %1063
  %1065 = vrot.lane.b32.xlu0 %v1027, 64
  %v1066 = vpop.permute.xlu0 %1065
  %1067 = vrot.lane.b32.xlu0 %v1028, 64
  %v1068 = vpop.permute.xlu0 %1067
  %1069 = vrot.lane.b32.xlu0 %v1029, 64
  %v1070 = vpop.permute.xlu0 %1069
  %1071 = vrot.lane.b32.xlu0 %v1030, 64
  %v1072 = vpop.permute.xlu0 %1071
  %1073 = vrot.lane.b32.xlu0 %v1031, 64
  %v1074 = vpop.permute.xlu0 %1073
  %1075 = vrot.lane.b32.xlu0 %v1032, 64
  %v1076 = vpop.permute.xlu0 %1075
  %1077 = vrot.lane.b32.xlu0 %v1033, 64
  %v1078 = vpop.permute.xlu0 %1077
  %1079 = vrot.lane.b32.xlu0 %v1034, 64
  %v1080 = vpop.permute.xlu0 %1079
  %1081 = vrot.lane.b32.xlu0 %v1035, 64
  %v1082 = vpop.permute.xlu0 %1081
  %1083 = vrot.lane.b32.xlu0 %v1036, 64
  %v1084 = vpop.permute.xlu0 %1083
  %1101 = vmatprep.subr.mxu0 0.0
  %1102 = vmatpush1.msra.mxu0 %v1084
  %1103 = vmatprep.subr.mxu0 0.0
  %1104 = vmatpush1.msra.mxu0 %v1082
  %1105 = vmatprep.subr.mxu0 0.0
  %1106 = vmatpush1.msra.mxu0 %v1080
  %1107 = vmatprep.subr.mxu0 0.0
  %1108 = vmatpush1.msra.mxu0 %v1078
  %1109 = vmatprep.subr.mxu0 0.0
  %1110 = vmatpush1.msra.mxu0 %v1076
  %1111 = vmatprep.subr.mxu0 0.0
  %1112 = vmatpush1.msra.mxu0 %v1074
  %1113 = vmatprep.subr.mxu0 0.0
  %1114 = vmatpush1.msra.mxu0 %v1072
  %1115 = vmatprep.subr.mxu0 0.0
  %1116 = vmatpush1.msra.mxu0 %v1070
  %1117 = vmatprep.subr.mxu0 0.0
  %1118 = vmatpush1.msra.mxu0 %v1068
  %1119 = vmatprep.subr.mxu0 0.0
  %1120 = vmatpush1.msra.mxu0 %v1066
  %1121 = vmatprep.subr.mxu0 0.0
  %1122 = vmatpush1.msra.mxu0 %v1064
  %1123 = vmatprep.subr.mxu0 0.0
  %1124 = vmatpush1.msra.mxu0 %v1062
  %1125 = vmatprep.subr.mxu0 0.0
  %1126 = vmatpush1.msra.mxu0 %v1060
  %1127 = vmatprep.subr.mxu0 0.0
  %1128 = vmatpush1.msra.mxu0 %v1058
  %1129 = vmatprep.subr.mxu0 0.0
  %1130 = vmatpush1.msra.mxu0 %v1056
  %1131 = vmatprep.subr.mxu0 0.0
  %1132 = vmatpush1.msra.mxu0 %v1054
  %1133 = vmatprep.subr.mxu0 0.0
  %1134 = vmatpush2.msra.mxu0 0.0
  %1135 = vmatprep.subr.mxu0 0.0
  %1136 = vmatpush2.msra.mxu0 0.0
  %1137 = vmatprep.subr.mxu0 0.0
  %1138 = vmatpush2.msra.mxu0 0.0
  %1139 = vmatprep.subr.mxu0 0.0
  %1140 = vmatpush2.msra.mxu0 0.0
  %1141 = vmatprep.subr.mxu0 0.0
  %1142 = vmatpush2.msra.mxu0 0.0
  %1143 = vmatprep.subr.mxu0 0.0
  %1144 = vmatpush2.msra.mxu0 0.0
  %1145 = vmatprep.subr.mxu0 0.0
  %1146 = vmatpush2.msra.mxu0 0.0
  %1147 = vmatprep.subr.mxu0 0.0
  %1148 = vmatpush2.msra.mxu0 0.0
  %1149 = vmatprep.subr.mxu0 0.0
  %1150 = vmatpush2.msra.mxu0 0.0
  %1151 = vmatprep.subr.mxu0 0.0
  %1152 = vmatpush2.msra.mxu0 0.0
  %1153 = vmatprep.subr.mxu0 0.0
  %1154 = vmatpush2.msra.mxu0 0.0
  %1155 = vmatprep.subr.mxu0 0.0
  %1156 = vmatpush2.msra.mxu0 0.0
  %1157 = vmatprep.subr.mxu0 0.0
  %1158 = vmatpush2.msra.mxu0 0.0
  %1159 = vmatprep.subr.mxu0 0.0
  %1160 = vmatpush2.msra.mxu0 0.0
  %1161 = vmatprep.subr.mxu0 0.0
  %1162 = vmatpush2.msra.mxu0 0.0
  %1163 = vmatprep.subr.mxu0 0.0
  %1164 = vmatpush2.msra.mxu0 0.0
  %1165 = vmatprep.mubr.f32.mxu0 0.0
  %1166 = vmatmul.mubr.f32.gmra.mxu0 %v966
  %v1167 = vpop.f32.mrf.mxu0
  %v1168 = vadd.f32 0.0, %v1167
  %v1169 = vpop.f32.mrf.mxu0
  %1170 = vmatprep.mubr.f32.mxu0 0.0
  %1171 = vmatmul.mubr.f32.gmra.mxu0 %v968
  %v1172 = vpop.f32.mrf.mxu0
  %v1173 = vadd.f32 0.0, %v1172
  %v1174 = vpop.f32.mrf.mxu0
  %1175 = vmatprep.mubr.f32.mxu0 0.0
  %1176 = vmatmul.mubr.f32.gmra.mxu0 %v970
  %v1177 = vpop.f32.mrf.mxu0
  %v1178 = vadd.f32 0.0, %v1177
  %v1179 = vpop.f32.mrf.mxu0
  %1180 = vmatprep.mubr.f32.mxu0 0.0
  %1181 = vmatmul.mubr.f32.gmra.mxu0 %v972
  %v1182 = vpop.f32.mrf.mxu0
  %v1183 = vadd.f32 0.0, %v1182
  %v1184 = vpop.f32.mrf.mxu0
  %1185 = vdwg.mxu0
  %1186 = vmatprep.subr.mxu0 0.0
  %1187 = vmatpush1.msra.mxu0 %v102
  %1188 = vmatprep.subr.mxu0 0.0
  %1189 = vmatpush1.msra.mxu0 %v101
  %1190 = vmatprep.subr.mxu0 0.0
  %1191 = vmatpush1.msra.mxu0 %v100
  %1192 = vmatprep.subr.mxu0 0.0
  %1193 = vmatpush1.msra.mxu0 %v99
  %1194 = vmatprep.subr.mxu0 0.0
  %1195 = vmatpush1.msra.mxu0 %v98
  %1196 = vmatprep.subr.mxu0 0.0
  %1197 = vmatpush1.msra.mxu0 %v97
  %1198 = vmatprep.subr.mxu0 0.0
  %1199 = vmatpush1.msra.mxu0 %v96
  %1200 = vmatprep.subr.mxu0 0.0
  %1201 = vmatpush1.msra.mxu0 %v95
  %1202 = vmatprep.subr.mxu0 0.0
  %1203 = vmatpush1.msra.mxu0 %v94
  %1204 = vmatprep.subr.mxu0 0.0
  %1205 = vmatpush1.msra.mxu0 %v93
  %1206 = vmatprep.subr.mxu0 0.0
  %1207 = vmatpush1.msra.mxu0 %v92
  %1208 = vmatprep.subr.mxu0 0.0
  %1209 = vmatpush1.msra.mxu0 %v91
  %1210 = vmatprep.subr.mxu0 0.0
  %1211 = vmatpush1.msra.mxu0 %v90
  %1212 = vmatprep.subr.mxu0 0.0
  %1213 = vmatpush1.msra.mxu0 %v89
  %1214 = vmatprep.subr.mxu0 0.0
  %1215 = vmatpush1.msra.mxu0 %v88
  %1216 = vmatprep.subr.mxu0 0.0
  %1217 = vmatpush1.msra.mxu0 %v87
  %1218 = vmatprep.subr.mxu0 0.0
  %1219 = vmatpush2.msra.mxu0 0.0
  %1220 = vmatprep.subr.mxu0 0.0
  %1221 = vmatpush2.msra.mxu0 0.0
  %1222 = vmatprep.subr.mxu0 0.0
  %1223 = vmatpush2.msra.mxu0 0.0
  %1224 = vmatprep.subr.mxu0 0.0
  %1225 = vmatpush2.msra.mxu0 0.0
  %1226 = vmatprep.subr.mxu0 0.0
  %1227 = vmatpush2.msra.mxu0 0.0
  %1228 = vmatprep.subr.mxu0 0.0
  %1229 = vmatpush2.msra.mxu0 0.0
  %1230 = vmatprep.subr.mxu0 0.0
  %1231 = vmatpush2.msra.mxu0 0.0
  %1232 = vmatprep.subr.mxu0 0.0
  %1233 = vmatpush2.msra.mxu0 0.0
  %1234 = vmatprep.subr.mxu0 0.0
  %1235 = vmatpush2.msra.mxu0 0.0
  %1236 = vmatprep.subr.mxu0 0.0
  %1237 = vmatpush2.msra.mxu0 0.0
  %1238 = vmatprep.subr.mxu0 0.0
  %1239 = vmatpush2.msra.mxu0 0.0
  %1240 = vmatprep.subr.mxu0 0.0
  %1241 = vmatpush2.msra.mxu0 0.0
  %1242 = vmatprep.subr.mxu0 0.0
  %1243 = vmatpush2.msra.mxu0 0.0
  %1244 = vmatprep.subr.mxu0 0.0
  %1245 = vmatpush2.msra.mxu0 0.0
  %1246 = vmatprep.subr.mxu0 0.0
  %1247 = vmatpush2.msra.mxu0 0.0
  %1248 = vmatprep.subr.mxu0 0.0
  %1249 = vmatpush2.msra.mxu0 0.0
  %1250 = vmatprep.mubr.f32.mxu0 0.0
  %1251 = vmatmul.mubr.f32.gmra.mxu0 %v966
  %v1252 = vpop.f32.mrf.mxu0
  %v1253 = vadd.f32 0.0, %v1252
  %v1254 = vpop.f32.mrf.mxu0
  %1255 = vmatprep.mubr.f32.mxu0 0.0
  %1256 = vmatmul.mubr.f32.gmra.mxu0 %v968
  %v1257 = vpop.f32.mrf.mxu0
  %v1258 = vadd.f32 0.0, %v1257
  %v1259 = vpop.f32.mrf.mxu0
  %1260 = vmatprep.mubr.f32.mxu0 0.0
  %1261 = vmatmul.mubr.f32.gmra.mxu0 %v970
  %v1262 = vpop.f32.mrf.mxu0
  %v1263 = vadd.f32 0.0, %v1262
  %v1264 = vpop.f32.mrf.mxu0
  %1265 = vmatprep.mubr.f32.mxu0 0.0
  %1266 = vmatmul.mubr.f32.gmra.mxu0 %v972
  %v1267 = vpop.f32.mrf.mxu0
  %v1268 = vadd.f32 0.0, %v1267
  %v1269 = vpop.f32.mrf.mxu0
  %1270 = vdwg.mxu0
  %v1271 = vrcp.pop %v1253
  %v1272 = vrcp.pop %v1258
  %v1273 = vrcp.pop %v1263
  %v1274 = vrcp.pop %v1268
  %v1275 = vmul.f32 %v1168, %v1271
  %v1276 = vmul.f32 %v1173, %v1272
  %v1277 = vmul.f32 %v1178, %v1273
  %v1278 = vmul.f32 %v1183, %v1274
  %v1280 = vsel %vm215, %v1275, 0
  %v1283 = vsel %vm215, %v1276, 0
  %v1286 = vsel %vm215, %v1277, 0
  %v1289 = vsel %vm215, %v1278, 0
  %1291 = vmatprep.subr.mxu0 0.0
  %1292 = vmatpush1.msra.mxu0 0.0
  %1293 = vmatprep.subr.mxu0 0.0
  %1294 = vmatpush1.msra.mxu0 0.0
  %1295 = vmatprep.subr.mxu0 0.0
  %1296 = vmatpush1.msra.mxu0 0.0
  %1297 = vmatprep.subr.mxu0 0.0
  %1298 = vmatpush1.msra.mxu0 0.0
  %1299 = vmatprep.subr.mxu0 0.0
  %1300 = vmatpush1.msra.mxu0 0.0
  %1301 = vmatprep.subr.mxu0 0.0
  %1302 = vmatpush1.msra.mxu0 0.0
  %1303 = vmatprep.subr.mxu0 0.0
  %1304 = vmatpush1.msra.mxu0 0.0
  %1305 = vmatprep.subr.mxu0 0.0
  %1306 = vmatpush1.msra.mxu0 0.0
  %1307 = vmatprep.subr.mxu0 0.0
  %1308 = vmatpush1.msra.mxu0 0.0
  %1309 = vmatprep.subr.mxu0 0.0
  %1310 = vmatpush1.msra.mxu0 0.0
  %1311 = vmatprep.subr.mxu0 0.0
  %1312 = vmatpush1.msra.mxu0 0.0
  %1313 = vmatprep.subr.mxu0 0.0
  %1314 = vmatpush1.msra.mxu0 0.0
  %1315 = vmatprep.subr.mxu0 0.0
  %1316 = vmatpush1.msra.mxu0 %v70
  %1317 = vmatprep.subr.mxu0 0.0
  %1318 = vmatpush1.msra.mxu0 %v69
  %1319 = vmatprep.subr.mxu0 0.0
  %1320 = vmatpush1.msra.mxu0 %v68
  %1321 = vmatprep.subr.mxu0 0.0
  %1322 = vmatpush1.msra.mxu0 %v67
  %1323 = vmatprep.subr.mxu0 0.0
  %1324 = vmatpush2.msra.mxu0 0.0
  %1325 = vmatprep.subr.mxu0 0.0
  %1326 = vmatpush2.msra.mxu0 0.0
  %1327 = vmatprep.subr.mxu0 0.0
  %1328 = vmatpush2.msra.mxu0 0.0
  %1329 = vmatprep.subr.mxu0 0.0
  %1330 = vmatpush2.msra.mxu0 0.0
  %1331 = vmatprep.subr.mxu0 0.0
  %1332 = vmatpush2.msra.mxu0 0.0
  %1333 = vmatprep.subr.mxu0 0.0
  %1334 = vmatpush2.msra.mxu0 0.0
  %1335 = vmatprep.subr.mxu0 0.0
  %1336 = vmatpush2.msra.mxu0 0.0
  %1337 = vmatprep.subr.mxu0 0.0
  %1338 = vmatpush2.msra.mxu0 0.0
  %1339 = vmatprep.subr.mxu0 0.0
  %1340 = vmatpush2.msra.mxu0 0.0
  %1341 = vmatprep.subr.mxu0 0.0
  %1342 = vmatpush2.msra.mxu0 0.0
  %1343 = vmatprep.subr.mxu0 0.0
  %1344 = vmatpush2.msra.mxu0 0.0
  %1345 = vmatprep.subr.mxu0 0.0
  %1346 = vmatpush2.msra.mxu0 0.0
  %1347 = vmatprep.subr.mxu0 0.0
  %1348 = vmatpush2.msra.mxu0 0.0
  %1349 = vmatprep.subr.mxu0 0.0
  %1350 = vmatpush2.msra.mxu0 0.0
  %1351 = vmatprep.subr.mxu0 0.0
  %1352 = vmatpush2.msra.mxu0 0.0
  %1353 = vmatprep.subr.mxu0 0.0
  %1354 = vmatpush2.msra.mxu0 0.0
  %1355 = vmatprep.mubr.f32.mxu0 0.0
  %1356 = vmatmul.mubr.f32.gmra.mxu0 %v1280
  %v1357 = vpop.f32.mrf.mxu0
  %v1358 = vadd.f32 0.0, %v1357
  %v1359 = vpop.f32.mrf.mxu0
  %1360 = vmatprep.mubr.f32.mxu0 0.0
  %1361 = vmatmul.mubr.f32.gmra.mxu0 %v1283
  %v1362 = vpop.f32.mrf.mxu0
  %v1363 = vadd.f32 0.0, %v1362
  %v1364 = vpop.f32.mrf.mxu0
  %1365 = vmatprep.mubr.f32.mxu0 0.0
  %1366 = vmatmul.mubr.f32.gmra.mxu0 %v1286
  %v1367 = vpop.f32.mrf.mxu0
  %v1368 = vadd.f32 0.0, %v1367
  %v1369 = vpop.f32.mrf.mxu0
  %1370 = vmatprep.mubr.f32.mxu0 0.0
  %1371 = vmatmul.mubr.f32.gmra.mxu0 %v1289
  %v1372 = vpop.f32.mrf.mxu0
  %v1373 = vadd.f32 0.0, %v1372
  %v1374 = vpop.f32.mrf.mxu0
  %1375 = vdwg.mxu0
  %v1376 = vadd.f32 %v500, %v1358
  %v1377 = vadd.f32 %v505, %v1363
  %v1378 = vadd.f32 %v510, %v1368
  %v1379 = vadd.f32 %v515, %v1373
  %v1380 = vlaneseq
  %v1381 = vshrl.u32 %v1380, 7
  %v1382 = vsub.s32 0, %v1381
  %v1383 = vrot.slane %v105, %v1382
  %v1384 = vadd.f32 %v1376, %v1383
  %v1385 = vadd.f32 %v1377, %v1383
  %v1386 = vadd.f32 %v1378, %v1383
  %v1387 = vadd.f32 %v1379, %v1383
  %v1388 = vsel %vm215, %v1384, 0.0
  %1389 = vadd.xlane.f32.xlu0 %v1388
  %v1390 = vpop.xlane.xlu0 %1389
  %v1391 = vsel %vm215, %v1385, 0.0
  %1392 = vadd.xlane.f32.xlu0 %v1391
  %v1393 = vpop.xlane.xlu0 %1392
  %v1394 = vsel %vm215, %v1386, 0.0
  %1395 = vadd.xlane.f32.xlu0 %v1394
  %v1396 = vpop.xlane.xlu0 %1395
  %v1397 = vsel %vm215, %v1387, 0.0
  %1398 = vadd.xlane.f32.xlu0 %v1397
  %v1399 = vpop.xlane.xlu0 %1398
  %v1400 = vmul.f32 %v1390, %v530
  %v1401 = vmul.f32 %v1393, %v530
  %v1402 = vmul.f32 %v1396, %v530
  %v1403 = vmul.f32 %v1399, %v530
  %v1404 = vsub.f32 %v1384, %v1400
  %v1405 = vsub.f32 %v1385, %v1401
  %v1406 = vsub.f32 %v1386, %v1402
  %v1407 = vsub.f32 %v1387, %v1403
  %v1408 = vmul.f32 %v1404, %v1404
  %v1409 = vmul.f32 %v1405, %v1405
  %v1410 = vmul.f32 %v1406, %v1406
  %v1411 = vmul.f32 %v1407, %v1407
  %v1412 = vsel %vm215, %v1408, 0.0
  %1413 = vadd.xlane.f32.xlu0 %v1412
  %v1414 = vpop.xlane.xlu0 %1413
  %v1415 = vsel %vm215, %v1409, 0.0
  %1416 = vadd.xlane.f32.xlu0 %v1415
  %v1417 = vpop.xlane.xlu0 %1416
  %v1418 = vsel %vm215, %v1410, 0.0
  %1419 = vadd.xlane.f32.xlu0 %v1418
  %v1420 = vpop.xlane.xlu0 %1419
  %v1421 = vsel %vm215, %v1411, 0.0
  %1422 = vadd.xlane.f32.xlu0 %v1421
  %v1423 = vpop.xlane.xlu0 %1422
  %v1424 = vmul.f32 %v1414, %v530
  %v1425 = vmul.f32 %v1417, %v530
  %v1426 = vmul.f32 %v1420, %v530
  %v1427 = vmul.f32 %v1423, %v530
  %v1428 = vadd.f32 %v1424, 1e-05
  %v1429 = vadd.f32 %v1425, 1e-05
  %v1430 = vadd.f32 %v1426, 1e-05
  %v1431 = vadd.f32 %v1427, 1e-05
  %v1432 = vrsqrt.pop %v1428
  %v1433 = vrsqrt.pop %v1429
  %v1434 = vrsqrt.pop %v1430
  %v1435 = vrsqrt.pop %v1431
  %v1436 = vmul.f32 %v1404, %v1432
  %v1437 = vmul.f32 %v1405, %v1433
  %v1438 = vmul.f32 %v1406, %v1434
  %v1439 = vmul.f32 %v1407, %v1435
  %v1440 = vlaneseq
  %v1441 = vshrl.u32 %v1440, 7
  %v1442 = vsub.s32 0, %v1441
  %v1443 = vrot.slane %v106, %v1442
  %v1444 = vmul.f32 %v1436, %v1443
  %v1445 = vmul.f32 %v1437, %v1443
  %v1446 = vmul.f32 %v1438, %v1443
  %v1447 = vmul.f32 %v1439, %v1443
  %v1448 = vlaneseq
  %v1449 = vshrl.u32 %v1448, 7
  %v1450 = vsub.s32 0, %v1449
  %v1451 = vrot.slane %v107, %v1450
  %v1452 = vadd.f32 %v1444, %v1451
  %v1453 = vadd.f32 %v1445, %v1451
  %v1454 = vadd.f32 %v1446, %v1451
  %v1455 = vadd.f32 %v1447, %v1451
  %v1456 = vlaneseq
  %v1457 = vshrl.u32 %v1456, 7
  %v1458 = vsub.s32 0, %v1457
  %v1459 = vrot.slane %v39, %v1458
  %v1461 = vsel %vm215, %v1452, 0
  %v1464 = vsel %vm215, %v1453, 0
  %v1467 = vsel %vm215, %v1454, 0
  %v1470 = vsel %vm215, %v1455, 0
  %1472 = vmatprep.subr.mxu0 0.0
  %1473 = vmatpush1.msra.mxu0 0.0
  %1474 = vmatprep.subr.mxu0 0.0
  %1475 = vmatpush1.msra.mxu0 0.0
  %1476 = vmatprep.subr.mxu0 0.0
  %1477 = vmatpush1.msra.mxu0 0.0
  %1478 = vmatprep.subr.mxu0 0.0
  %1479 = vmatpush1.msra.mxu0 0.0
  %1480 = vmatprep.subr.mxu0 0.0
  %1481 = vmatpush1.msra.mxu0 0.0
  %1482 = vmatprep.subr.mxu0 0.0
  %1483 = vmatpush1.msra.mxu0 0.0
  %1484 = vmatprep.subr.mxu0 0.0
  %1485 = vmatpush1.msra.mxu0 0.0
  %1486 = vmatprep.subr.mxu0 0.0
  %1487 = vmatpush1.msra.mxu0 0.0
  %1488 = vmatprep.subr.mxu0 0.0
  %1489 = vmatpush1.msra.mxu0 0.0
  %1490 = vmatprep.subr.mxu0 0.0
  %1491 = vmatpush1.msra.mxu0 0.0
  %1492 = vmatprep.subr.mxu0 0.0
  %1493 = vmatpush1.msra.mxu0 0.0
  %1494 = vmatprep.subr.mxu0 0.0
  %1495 = vmatpush1.msra.mxu0 0.0
  %1496 = vmatprep.subr.mxu0 0.0
  %1497 = vmatpush1.msra.mxu0 %v28
  %1498 = vmatprep.subr.mxu0 0.0
  %1499 = vmatpush1.msra.mxu0 %v27
  %1500 = vmatprep.subr.mxu0 0.0
  %1501 = vmatpush1.msra.mxu0 %v26
  %1502 = vmatprep.subr.mxu0 0.0
  %1503 = vmatpush1.msra.mxu0 %v25
  %1504 = vmatprep.subr.mxu0 0.0
  %1505 = vmatpush2.msra.mxu0 0.0
  %1506 = vmatprep.subr.mxu0 0.0
  %1507 = vmatpush2.msra.mxu0 0.0
  %1508 = vmatprep.subr.mxu0 0.0
  %1509 = vmatpush2.msra.mxu0 0.0
  %1510 = vmatprep.subr.mxu0 0.0
  %1511 = vmatpush2.msra.mxu0 0.0
  %1512 = vmatprep.subr.mxu0 0.0
  %1513 = vmatpush2.msra.mxu0 0.0
  %1514 = vmatprep.subr.mxu0 0.0
  %1515 = vmatpush2.msra.mxu0 0.0
  %1516 = vmatprep.subr.mxu0 0.0
  %1517 = vmatpush2.msra.mxu0 0.0
  %1518 = vmatprep.subr.mxu0 0.0
  %1519 = vmatpush2.msra.mxu0 0.0
  %1520 = vmatprep.subr.mxu0 0.0
  %1521 = vmatpush2.msra.mxu0 0.0
  %1522 = vmatprep.subr.mxu0 0.0
  %1523 = vmatpush2.msra.mxu0 0.0
  %1524 = vmatprep.subr.mxu0 0.0
  %1525 = vmatpush2.msra.mxu0 0.0
  %1526 = vmatprep.subr.mxu0 0.0
  %1527 = vmatpush2.msra.mxu0 0.0
  %1528 = vmatprep.subr.mxu0 0.0
  %1529 = vmatpush2.msra.mxu0 0.0
  %1530 = vmatprep.subr.mxu0 0.0
  %1531 = vmatpush2.msra.mxu0 0.0
  %1532 = vmatprep.subr.mxu0 0.0
  %1533 = vmatpush2.msra.mxu0 0.0
  %1534 = vmatprep.subr.mxu0 0.0
  %1535 = vmatpush2.msra.mxu0 0.0
  %1536 = vmatprep.mubr.f32.mxu0 0.0
  %1537 = vmatmul.mubr.f32.gmra.mxu0 %v1461
  %v1538 = vpop.f32.mrf.mxu0
  %v1539 = vadd.f32 %v1459, %v1538
  %v1540 = vpop.f32.mrf.mxu0
  %1541 = vmatprep.mubr.f32.mxu0 0.0
  %1542 = vmatmul.mubr.f32.gmra.mxu0 %v1464
  %v1543 = vpop.f32.mrf.mxu0
  %v1544 = vadd.f32 %v1459, %v1543
  %v1545 = vpop.f32.mrf.mxu0
  %1546 = vmatprep.mubr.f32.mxu0 0.0
  %1547 = vmatmul.mubr.f32.gmra.mxu0 %v1467
  %v1548 = vpop.f32.mrf.mxu0
  %v1549 = vadd.f32 %v1459, %v1548
  %v1550 = vpop.f32.mrf.mxu0
  %1551 = vmatprep.mubr.f32.mxu0 0.0
  %1552 = vmatmul.mubr.f32.gmra.mxu0 %v1470
  %v1553 = vpop.f32.mrf.mxu0
  %v1554 = vadd.f32 %v1459, %v1553
  %v1555 = vpop.f32.mrf.mxu0
  %1556 = vdwg.mxu0
  %v1557 = vmul.f32 %v1539, %v1539
  %v1558 = vmul.f32 %v1544, %v1544
  %v1559 = vmul.f32 %v1549, %v1549
  %v1560 = vmul.f32 %v1554, %v1554
  %v1561 = vmul.f32 %v1539, %v1557
  %v1562 = vmul.f32 %v1544, %v1558
  %v1563 = vmul.f32 %v1549, %v1559
  %v1564 = vmul.f32 %v1554, %v1560
  %v1565 = vmul.f32 %v1561, 0.044715
  %v1566 = vmul.f32 %v1562, 0.044715
  %v1567 = vmul.f32 %v1563, 0.044715
  %v1568 = vmul.f32 %v1564, 0.044715
  %v1569 = vadd.f32 %v1539, %v1565
  %v1570 = vadd.f32 %v1544, %v1566
  %v1571 = vadd.f32 %v1549, %v1567
  %v1572 = vadd.f32 %v1554, %v1568
  %v1573 = vmul.f32 %v1569, 0.7978846
  %v1574 = vmul.f32 %v1570, 0.7978846
  %v1575 = vmul.f32 %v1571, 0.7978846
  %v1576 = vmul.f32 %v1572, 0.7978846
  %v1577 = vtanh.pop %v1573
  %v1578 = vtanh.pop %v1574
  %v1579 = vtanh.pop %v1575
  %v1580 = vtanh.pop %v1576
  %v1581 = vadd.f32 %v1577, 1.0
  %v1582 = vadd.f32 %v1578, 1.0
  %v1583 = vadd.f32 %v1579, 1.0
  %v1584 = vadd.f32 %v1580, 1.0
  %v1585 = vmul.f32 %v1581, 0.5
  %v1586 = vmul.f32 %v1582, 0.5
  %v1587 = vmul.f32 %v1583, 0.5
  %v1588 = vmul.f32 %v1584, 0.5
  %v1589 = vmul.f32 %v1539, %v1585
  %v1590 = vmul.f32 %v1544, %v1586
  %v1591 = vmul.f32 %v1549, %v1587
  %v1592 = vmul.f32 %v1554, %v1588
  %1593 = vmatprep.subr.mxu0 0.0
  %1594 = vmatpush1.msra.mxu0 %v86
  %1595 = vmatprep.subr.mxu0 0.0
  %1596 = vmatpush1.msra.mxu0 %v85
  %1597 = vmatprep.subr.mxu0 0.0
  %1598 = vmatpush1.msra.mxu0 %v84
  %1599 = vmatprep.subr.mxu0 0.0
  %1600 = vmatpush1.msra.mxu0 %v83
  %1601 = vmatprep.subr.mxu0 0.0
  %1602 = vmatpush1.msra.mxu0 %v82
  %1603 = vmatprep.subr.mxu0 0.0
  %1604 = vmatpush1.msra.mxu0 %v81
  %1605 = vmatprep.subr.mxu0 0.0
  %1606 = vmatpush1.msra.mxu0 %v80
  %1607 = vmatprep.subr.mxu0 0.0
  %1608 = vmatpush1.msra.mxu0 %v79
  %1609 = vmatprep.subr.mxu0 0.0
  %1610 = vmatpush1.msra.mxu0 %v78
  %1611 = vmatprep.subr.mxu0 0.0
  %1612 = vmatpush1.msra.mxu0 %v77
  %1613 = vmatprep.subr.mxu0 0.0
  %1614 = vmatpush1.msra.mxu0 %v76
  %1615 = vmatprep.subr.mxu0 0.0
  %1616 = vmatpush1.msra.mxu0 %v75
  %1617 = vmatprep.subr.mxu0 0.0
  %1618 = vmatpush1.msra.mxu0 %v74
  %1619 = vmatprep.subr.mxu0 0.0
  %1620 = vmatpush1.msra.mxu0 %v73
  %1621 = vmatprep.subr.mxu0 0.0
  %1622 = vmatpush1.msra.mxu0 %v72
  %1623 = vmatprep.subr.mxu0 0.0
  %1624 = vmatpush1.msra.mxu0 %v71
  %1625 = vmatprep.subr.mxu0 0.0
  %1626 = vmatpush2.msra.mxu0 0.0
  %1627 = vmatprep.subr.mxu0 0.0
  %1628 = vmatpush2.msra.mxu0 0.0
  %1629 = vmatprep.subr.mxu0 0.0
  %1630 = vmatpush2.msra.mxu0 0.0
  %1631 = vmatprep.subr.mxu0 0.0
  %1632 = vmatpush2.msra.mxu0 0.0
  %1633 = vmatprep.subr.mxu0 0.0
  %1634 = vmatpush2.msra.mxu0 0.0
  %1635 = vmatprep.subr.mxu0 0.0
  %1636 = vmatpush2.msra.mxu0 0.0
  %1637 = vmatprep.subr.mxu0 0.0
  %1638 = vmatpush2.msra.mxu0 0.0
  %1639 = vmatprep.subr.mxu0 0.0
  %1640 = vmatpush2.msra.mxu0 0.0
  %1641 = vmatprep.subr.mxu0 0.0
  %1642 = vmatpush2.msra.mxu0 0.0
  %1643 = vmatprep.subr.mxu0 0.0
  %1644 = vmatpush2.msra.mxu0 0.0
  %1645 = vmatprep.subr.mxu0 0.0
  %1646 = vmatpush2.msra.mxu0 0.0
  %1647 = vmatprep.subr.mxu0 0.0
  %1648 = vmatpush2.msra.mxu0 0.0
  %1649 = vmatprep.subr.mxu0 0.0
  %1650 = vmatpush2.msra.mxu0 0.0
  %1651 = vmatprep.subr.mxu0 0.0
  %1652 = vmatpush2.msra.mxu0 0.0
  %1653 = vmatprep.subr.mxu0 0.0
  %1654 = vmatpush2.msra.mxu0 0.0
  %1655 = vmatprep.subr.mxu0 0.0
  %1656 = vmatpush2.msra.mxu0 0.0
  %1657 = vmatprep.mubr.f32.mxu0 0.0
  %1658 = vmatmul.mubr.f32.gmra.mxu0 %v1589
  %v1659 = vpop.f32.mrf.mxu0
  %v1660 = vadd.f32 0.0, %v1659
  %v1661 = vpop.f32.mrf.mxu0
  %1662 = vmatprep.mubr.f32.mxu0 0.0
  %1663 = vmatmul.mubr.f32.gmra.mxu0 %v1590
  %v1664 = vpop.f32.mrf.mxu0
  %v1665 = vadd.f32 0.0, %v1664
  %v1666 = vpop.f32.mrf.mxu0
  %1667 = vmatprep.mubr.f32.mxu0 0.0
  %1668 = vmatmul.mubr.f32.gmra.mxu0 %v1591
  %v1669 = vpop.f32.mrf.mxu0
  %v1670 = vadd.f32 0.0, %v1669
  %v1671 = vpop.f32.mrf.mxu0
  %1672 = vmatprep.mubr.f32.mxu0 0.0
  %1673 = vmatmul.mubr.f32.gmra.mxu0 %v1592
  %v1674 = vpop.f32.mrf.mxu0
  %v1675 = vadd.f32 0.0, %v1674
  %v1676 = vpop.f32.mrf.mxu0
  %1677 = vdwg.mxu0
  %v1678 = vadd.f32 %v1384, %v1660
  %v1679 = vadd.f32 %v1385, %v1665
  %v1680 = vadd.f32 %v1386, %v1670
  %v1681 = vadd.f32 %v1387, %v1675
  %v1682 = vlaneseq
  %v1683 = vshrl.u32 %v1682, 7
  %v1684 = vsub.s32 0, %v1683
  %v1685 = vrot.slane %v108, %v1684
  %v1686 = vadd.f32 %v1678, %v1685
  %v1687 = vadd.f32 %v1679, %v1685
  %v1688 = vadd.f32 %v1680, %v1685
  %v1689 = vadd.f32 %v1681, %v1685
  %v1690 = vsel %vm215, %v1686, 0.0
  %1691 = vadd.xlane.f32.xlu0 %v1690
  %v1692 = vpop.xlane.xlu0 %1691
  %v1693 = vsel %vm215, %v1687, 0.0
  %1694 = vadd.xlane.f32.xlu0 %v1693
  %v1695 = vpop.xlane.xlu0 %1694
  %v1696 = vsel %vm215, %v1688, 0.0
  %1697 = vadd.xlane.f32.xlu0 %v1696
  %v1698 = vpop.xlane.xlu0 %1697
  %v1699 = vsel %vm215, %v1689, 0.0
  %1700 = vadd.xlane.f32.xlu0 %v1699
  %v1701 = vpop.xlane.xlu0 %1700
  %v1702 = vmul.f32 %v1692, %v530
  %v1703 = vmul.f32 %v1695, %v530
  %v1704 = vmul.f32 %v1698, %v530
  %v1705 = vmul.f32 %v1701, %v530
  %v1706 = vsub.f32 %v1686, %v1702
  %v1707 = vsub.f32 %v1687, %v1703
  %v1708 = vsub.f32 %v1688, %v1704
  %v1709 = vsub.f32 %v1689, %v1705
  %v1710 = vmul.f32 %v1706, %v1706
  %v1711 = vmul.f32 %v1707, %v1707
  %v1712 = vmul.f32 %v1708, %v1708
  %v1713 = vmul.f32 %v1709, %v1709
  %v1714 = vsel %vm215, %v1710, 0.0
  %1715 = vadd.xlane.f32.xlu0 %v1714
  %v1716 = vpop.xlane.xlu0 %1715
  %v1717 = vsel %vm215, %v1711, 0.0
  %1718 = vadd.xlane.f32.xlu0 %v1717
  %v1719 = vpop.xlane.xlu0 %1718
  %v1720 = vsel %vm215, %v1712, 0.0
  %1721 = vadd.xlane.f32.xlu0 %v1720
  %v1722 = vpop.xlane.xlu0 %1721
  %v1723 = vsel %vm215, %v1713, 0.0
  %1724 = vadd.xlane.f32.xlu0 %v1723
  %v1725 = vpop.xlane.xlu0 %1724
  %v1726 = vmul.f32 %v1716, %v530
  %v1727 = vmul.f32 %v1719, %v530
  %v1728 = vmul.f32 %v1722, %v530
  %v1729 = vmul.f32 %v1725, %v530
  %v1730 = vadd.f32 %v1726, 1e-05
  %v1731 = vadd.f32 %v1727, 1e-05
  %v1732 = vadd.f32 %v1728, 1e-05
  %v1733 = vadd.f32 %v1729, 1e-05
  %v1734 = vrsqrt.pop %v1730
  %v1735 = vrsqrt.pop %v1731
  %v1736 = vrsqrt.pop %v1732
  %v1737 = vrsqrt.pop %v1733
  %v1738 = vmul.f32 %v1706, %v1734
  %v1739 = vmul.f32 %v1707, %v1735
  %v1740 = vmul.f32 %v1708, %v1736
  %v1741 = vmul.f32 %v1709, %v1737
  %v1742 = vlaneseq
  %v1743 = vshrl.u32 %v1742, 7
  %v1744 = vsub.s32 0, %v1743
  %v1745 = vrot.slane %v109, %v1744
  %v1746 = vmul.f32 %v1738, %v1745
  %v1747 = vmul.f32 %v1739, %v1745
  %v1748 = vmul.f32 %v1740, %v1745
  %v1749 = vmul.f32 %v1741, %v1745
  %v1750 = vlaneseq
  %v1751 = vshrl.u32 %v1750, 7
  %v1752 = vsub.s32 0, %v1751
  %v1753 = vrot.slane %v110, %v1752
  %v1754 = vadd.f32 %v1746, %v1753
  %v1755 = vadd.f32 %v1747, %v1753
  %v1756 = vadd.f32 %v1748, %v1753
  %v1757 = vadd.f32 %v1749, %v1753
  %v1758 = vlaneseq
  %v1759 = vshrl.u32 %v1758, 7
  %v1760 = vsub.s32 0, %v1759
  %v1761 = vrot.slane %v40, %v1760
  %v1763 = vsel %vm215, %v1754, 0
  %v1766 = vsel %vm215, %v1755, 0
  %v1769 = vsel %vm215, %v1756, 0
  %v1772 = vsel %vm215, %v1757, 0
  %1774 = vmatprep.subr.mxu0 0.0
  %1775 = vmatpush1.msra.mxu0 0.0
  %1776 = vmatprep.subr.mxu0 0.0
  %1777 = vmatpush1.msra.mxu0 0.0
  %1778 = vmatprep.subr.mxu0 0.0
  %1779 = vmatpush1.msra.mxu0 0.0
  %1780 = vmatprep.subr.mxu0 0.0
  %1781 = vmatpush1.msra.mxu0 0.0
  %1782 = vmatprep.subr.mxu0 0.0
  %1783 = vmatpush1.msra.mxu0 0.0
  %1784 = vmatprep.subr.mxu0 0.0
  %1785 = vmatpush1.msra.mxu0 0.0
  %1786 = vmatprep.subr.mxu0 0.0
  %1787 = vmatpush1.msra.mxu0 0.0
  %1788 = vmatprep.subr.mxu0 0.0
  %1789 = vmatpush1.msra.mxu0 0.0
  %1790 = vmatprep.subr.mxu0 0.0
  %1791 = vmatpush1.msra.mxu0 0.0
  %1792 = vmatprep.subr.mxu0 0.0
  %1793 = vmatpush1.msra.mxu0 0.0
  %1794 = vmatprep.subr.mxu0 0.0
  %1795 = vmatpush1.msra.mxu0 0.0
  %1796 = vmatprep.subr.mxu0 0.0
  %1797 = vmatpush1.msra.mxu0 0.0
  %1798 = vmatprep.subr.mxu0 0.0
  %1799 = vmatpush1.msra.mxu0 %v32
  %1800 = vmatprep.subr.mxu0 0.0
  %1801 = vmatpush1.msra.mxu0 %v31
  %1802 = vmatprep.subr.mxu0 0.0
  %1803 = vmatpush1.msra.mxu0 %v30
  %1804 = vmatprep.subr.mxu0 0.0
  %1805 = vmatpush1.msra.mxu0 %v29
  %1806 = vmatprep.subr.mxu0 0.0
  %1807 = vmatpush2.msra.mxu0 0.0
  %1808 = vmatprep.subr.mxu0 0.0
  %1809 = vmatpush2.msra.mxu0 0.0
  %1810 = vmatprep.subr.mxu0 0.0
  %1811 = vmatpush2.msra.mxu0 0.0
  %1812 = vmatprep.subr.mxu0 0.0
  %1813 = vmatpush2.msra.mxu0 0.0
  %1814 = vmatprep.subr.mxu0 0.0
  %1815 = vmatpush2.msra.mxu0 0.0
  %1816 = vmatprep.subr.mxu0 0.0
  %1817 = vmatpush2.msra.mxu0 0.0
  %1818 = vmatprep.subr.mxu0 0.0
  %1819 = vmatpush2.msra.mxu0 0.0
  %1820 = vmatprep.subr.mxu0 0.0
  %1821 = vmatpush2.msra.mxu0 0.0
  %1822 = vmatprep.subr.mxu0 0.0
  %1823 = vmatpush2.msra.mxu0 0.0
  %1824 = vmatprep.subr.mxu0 0.0
  %1825 = vmatpush2.msra.mxu0 0.0
  %1826 = vmatprep.subr.mxu0 0.0
  %1827 = vmatpush2.msra.mxu0 0.0
  %1828 = vmatprep.subr.mxu0 0.0
  %1829 = vmatpush2.msra.mxu0 0.0
  %1830 = vmatprep.subr.mxu0 0.0
  %1831 = vmatpush2.msra.mxu0 0.0
  %1832 = vmatprep.subr.mxu0 0.0
  %1833 = vmatpush2.msra.mxu0 0.0
  %1834 = vmatprep.subr.mxu0 0.0
  %1835 = vmatpush2.msra.mxu0 0.0
  %1836 = vmatprep.subr.mxu0 0.0
  %1837 = vmatpush2.msra.mxu0 0.0
  %1838 = vmatprep.mubr.f32.mxu0 0.0
  %1839 = vmatmul.mubr.f32.gmra.mxu0 %v1763
  %v1840 = vpop.f32.mrf.mxu0
  %v1841 = vadd.f32 %v1761, %v1840
  %v1842 = vpop.f32.mrf.mxu0
  %1843 = vmatprep.mubr.f32.mxu0 0.0
  %1844 = vmatmul.mubr.f32.gmra.mxu0 %v1766
  %v1845 = vpop.f32.mrf.mxu0
  %v1846 = vadd.f32 %v1761, %v1845
  %v1847 = vpop.f32.mrf.mxu0
  %1848 = vmatprep.mubr.f32.mxu0 0.0
  %1849 = vmatmul.mubr.f32.gmra.mxu0 %v1769
  %v1850 = vpop.f32.mrf.mxu0
  %v1851 = vadd.f32 %v1761, %v1850
  %v1852 = vpop.f32.mrf.mxu0
  %1853 = vmatprep.mubr.f32.mxu0 0.0
  %1854 = vmatmul.mubr.f32.gmra.mxu0 %v1772
  %v1855 = vpop.f32.mrf.mxu0
  %v1856 = vadd.f32 %v1761, %v1855
  %v1857 = vpop.f32.mrf.mxu0
  %1858 = vdwg.mxu0
  %vm1859 = vcmp.eq.s32.totalorder %v112, 127
  %v1860 = vcvt.s32.f32 %v354
  %v1861 = vcvt.s32.f32 %v368
  %v1862 = vcvt.s32.f32 %v382
  %v1863 = vcvt.s32.f32 %v396
  %v1864 = vsel %vm1859, %v1860, %v1841
  %v1865 = vsel %vm1859, %v1861, %v1846
  %v1866 = vsel %vm1859, %v1862, %v1851
  %v1867 = vsel %vm1859, %v1863, %v1856
  %1868 = vst [vmem:[%s4] sm:$0xff] %v1864
  %1869 = vst [vmem:[%s4 + $0x8] sm:$0xff] %v1865
  %1870 = vst [vmem:[%s4 + $0x10] sm:$0xff] %v1866
  %1871 = vst [vmem:[%s4 + $0x18] sm:$0xff] %v1867
  // Predicated region
  $region18: #{maskgit_forward.3} parent=0 // pred_check
    _
  $region19: #{maskgit_forward.3} parent=0 // pred_check_branch
    %1873 = sbr.rel (0) target = $region21
  $region20: #{maskgit_forward.3} parent=0 // pred_region
    _
  $region21: #{maskgit_forward.3} parent=0 // pred_fallthru
    _
  // Predicated region
  $region22: #{maskgit_forward.3} parent=0 // pred_check
    _
  $region23: #{maskgit_forward.3} parent=0 // pred_check_branch
    %1875 = sbr.rel (0) target = $region25
  $region24: #{maskgit_forward.3} parent=0 // pred_region
    _
  $region25: #{maskgit_forward.3} parent=0 // pred_fallthru
    _

</llo_original>
